<compile_context>
chip_gen: v5e
topology: v5e:2x2
jax: 0.10.0
libtpu: 0.0.40
codegen_flags: <defaults>
</compile_context>

<pallas_src>
import functools

import jax
import jax.numpy as jnp
from jax.experimental import pallas as pl
from jax.experimental.pallas import tpu as pltpu

IN_DIM = 784
HID_DIM = 128
OUT_DIM = 10
OUT_PAD = 128  # lane-dense padded output width (multiple of 128)


def _round_up(n, m):
    return ((n + m - 1) // m) * m


def mlp_kernel(x_ref, w1_ref, b1_ref, w2_ref, b2_ref, o_ref):
    # fc1 + ReLU: MXU matmul with f32 accumulation; bias add / ReLU ride the
    # VPU for free under the MXU/DMA bottleneck.
    h = jnp.dot(x_ref[...], w1_ref[...], preferred_element_type=jnp.float32)
    h = jnp.maximum(h + b1_ref[...], 0.0)          # b1 is (1, 128) -> broadcast
    # fc2: 128 -> 128 padded lanes (real outputs live in [:, :OUT_DIM]).
    out = jnp.dot(h, w2_ref[...], preferred_element_type=jnp.float32)
    out = out + b2_ref[...]                        # b2 is (1, OUT_PAD)
    o_ref[...] = out.astype(o_ref.dtype)


@functools.partial(jax.jit, static_argnames=("bm", "use_bf16"))
def net_forward(x, w1, b1, w2, b2, *, bm=512, use_bf16=False):
    """Forward pass of Net: relu(x @ w1 + b1) @ w2 + b2.

    x : (B, 784) f32
    w1: (784, 128), b1: (1, 128), w2: (128, 10), b2: (1, 10)
    """
    B = x.shape[0]

    # Don't use a tile larger than the (MXU-aligned) batch; keep bm a
    # multiple of 256 so the final MXU pass isn't row-padded.
    bm = min(bm, _round_up(B, 256))
    b_pad = _round_up(B, bm)
    grid = (pl.cdiv(b_pad, bm),)

    # Zero-pad the batch so the grid divides evenly; padded rows sliced off.
    if b_pad != B:
        x = jnp.pad(x, ((0, b_pad - B), (0, 0)))

    # Pad fc2 to a full 128-lane output block -> unmasked lane-dense stores.
    w2p = jnp.pad(w2, ((0, 0), (0, OUT_PAD - OUT_DIM)))
    b2p = jnp.pad(b2, ((0, 0), (0, OUT_PAD - OUT_DIM)))

    if use_bf16:
        # Halves streamed HBM bytes for x; MXU consumes bf16 natively with
        # f32 accumulation (~1e-2 level deviation from the f32 reference).
        x = x.astype(jnp.bfloat16)
        w1 = w1.astype(jnp.bfloat16)

    out = pl.pallas_call(
        mlp_kernel,
        out_shape=jax.ShapeDtypeStruct((b_pad, OUT_PAD), jnp.float32),
        grid_spec=pltpu.PrefetchScalarGridSpec(
            num_scalar_prefetch=0,
            grid=grid,
            in_specs=[
                pl.BlockSpec((bm, IN_DIM), lambda i: (i, 0)),        # x tile (streamed)
                pl.BlockSpec((IN_DIM, HID_DIM), lambda i: (0, 0)),   # W1 (VMEM-resident)
                pl.BlockSpec((1, HID_DIM), lambda i: (0, 0)),        # b1 (resident)
                pl.BlockSpec((HID_DIM, OUT_PAD), lambda i: (0, 0)),  # W2 padded (resident)
                pl.BlockSpec((1, OUT_PAD), lambda i: (0, 0)),        # b2 padded (resident)
            ],
            out_specs=pl.BlockSpec((bm, OUT_PAD), lambda i: (i, 0)),
        ),
        compiler_params=pltpu.CompilerParams(
            # Batch axis is embarrassingly parallel -> shards across both
            # TensorCores on v7x when grid >= 2.
            dimension_semantics=("parallel",),
        ),
    )(x, w1, b1, w2p, b2p)

    return out[:B, :OUT_DIM]


def init_params(key):
    # Deterministic init mimicking PyTorch nn.Linear default:
    # U(-1/sqrt(fan_in), 1/sqrt(fan_in)) for both weight and bias.
    k1, k2, k3, k4 = jax.random.split(key, 4)
    bound1 = 1.0 / jnp.sqrt(IN_DIM)
    bound2 = 1.0 / jnp.sqrt(HID_DIM)
    w1 = jax.random.uniform(k1, (IN_DIM, HID_DIM), jnp.float32, -bound1, bound1)
    b1 = jax.random.uniform(k2, (1, HID_DIM), jnp.float32, -bound1, bound1)
    w2 = jax.random.uniform(k3, (HID_DIM, OUT_DIM), jnp.float32, -bound2, bound2)
    b2 = jax.random.uniform(k4, (1, OUT_DIM), jnp.float32, -bound2, bound2)
    return w1, b1, w2, b2


def _ref(x, w1, b1, w2, b2):
    return jnp.maximum(x @ w1 + b1, 0.0) @ w2 + b2


if __name__ == "__main__":
    key = jax.random.PRNGKey(0)
    kx, kx2, kp = jax.random.split(key, 3)
    w1, b1, w2, b2 = init_params(kp)

    # Small batch (exercises bm clamping + batch zero-padding path).
    B_small = 8
    x_small = jax.random.normal(kx, (B_small, IN_DIM), jnp.float32)
    out_small = jax.block_until_ready(net_forward(x_small, w1, b1, w2, b2))
    assert out_small.shape == (B_small, OUT_DIM)
    assert jnp.allclose(out_small, _ref(x_small, w1, b1, w2, b2),
                        atol=1e-4, rtol=1e-4)

    # Larger, non-divisible batch (exercises multi-step grid + ragged tail).
    B_big = 1000
    x_big = jax.random.normal(kx2, (B_big, IN_DIM), jnp.float32)
    out_big = jax.block_until_ready(net_forward(x_big, w1, b1, w2, b2))
    assert out_big.shape == (B_big, OUT_DIM)
    assert jnp.allclose(out_big, _ref(x_big, w1, b1, w2, b2),
                        atol=1e-4, rtol=1e-4)

    print("KERNEL_OK")
</pallas_src>

<mosaic_0001>
module attributes {stable_mosaic.version = 11 : i64} {
  func.func @mlp_kernel(%arg0: i32, %arg1: memref<256x784xf32, #tpu.memory_space<vmem>>, %arg2: memref<784x128xf32, #tpu.memory_space<vmem>>, %arg3: memref<1x128xf32, #tpu.memory_space<vmem>>, %arg4: memref<128x128xf32, #tpu.memory_space<vmem>>, %arg5: memref<1x128xf32, #tpu.memory_space<vmem>>, %arg6: memref<256x128xf32, #tpu.memory_space<vmem>>) attributes {dimension_semantics = [#tpu.dimension_semantics<parallel>], iteration_bounds = array<i64: 1>, scalar_prefetch = 0 : i64, scratch_operands = 0 : i64, tpu.core_type = #tpu.core_type<tc>, window_params = [{transform_indices = @transform_0, window_bounds = array<i64: 256, 784>}, {pipeline_mode = #tpu.pipeline_mode<synchronous>, transform_indices = @transform_1, window_bounds = array<i64: 784, 128>}, {pipeline_mode = #tpu.pipeline_mode<synchronous>, transform_indices = @transform_2, window_bounds = array<i64: 1, 128>}, {pipeline_mode = #tpu.pipeline_mode<synchronous>, transform_indices = @transform_3, window_bounds = array<i64: 128, 128>}, {pipeline_mode = #tpu.pipeline_mode<synchronous>, transform_indices = @transform_4, window_bounds = array<i64: 1, 128>}, {transform_indices = @transform_5, window_bounds = array<i64: 256, 128>}]} {
    %c0 = arith.constant 0 : index
    %c0_0 = arith.constant 0 : index
    %0 = vector.load %arg1[%c0, %c0_0] : memref<256x784xf32, #tpu.memory_space<vmem>>, vector<256x784xf32>
    %c0_1 = arith.constant 0 : index
    %c0_2 = arith.constant 0 : index
    %1 = vector.load %arg2[%c0_1, %c0_2] : memref<784x128xf32, #tpu.memory_space<vmem>>, vector<784x128xf32>
    %cst = arith.constant dense<0.000000e+00> : vector<256x128xf32>
    %2 = tpu.matmul %0, %1, %cst {dimension_numbers = #tpu.dot_dimension_numbers<[1], [0], [0], [1], [0, 0, 1, 1], [], []>} : vector<256x784xf32>, vector<784x128xf32>, vector<256x128xf32> -> vector<256x128xf32>
    %c0_3 = arith.constant 0 : index
    %c0_4 = arith.constant 0 : index
    %3 = vector.load %arg3[%c0_3, %c0_4] : memref<1x128xf32, #tpu.memory_space<vmem>>, vector<1x128xf32>
    %4 = vector.broadcast %3 : vector<1x128xf32> to vector<256x128xf32>
    %5 = arith.addf %2, %4 : vector<256x128xf32>
    %cst_5 = arith.constant 0.000000e+00 : f32
    %6 = vector.broadcast %cst_5 : f32 to vector<256x128xf32>
    %7 = arith.maximumf %5, %6 : vector<256x128xf32>
    %c0_6 = arith.constant 0 : index
    %c0_7 = arith.constant 0 : index
    %8 = vector.load %arg4[%c0_6, %c0_7] : memref<128x128xf32, #tpu.memory_space<vmem>>, vector<128x128xf32>
    %cst_8 = arith.constant dense<0.000000e+00> : vector<256x128xf32>
    %9 = tpu.matmul %7, %8, %cst_8 {dimension_numbers = #tpu.dot_dimension_numbers<[1], [0], [0], [1], [0, 0, 1, 1], [], []>} : vector<256x128xf32>, vector<128x128xf32>, vector<256x128xf32> -> vector<256x128xf32>
    %c0_9 = arith.constant 0 : index
    %c0_10 = arith.constant 0 : index
    %10 = vector.load %arg5[%c0_9, %c0_10] : memref<1x128xf32, #tpu.memory_space<vmem>>, vector<1x128xf32>
    %11 = vector.broadcast %10 : vector<1x128xf32> to vector<256x128xf32>
    %12 = arith.addf %9, %11 : vector<256x128xf32>
    %c0_11 = arith.constant 0 : index
    %c0_12 = arith.constant 0 : index
    %13 = vector.load %arg6[%c0_11, %c0_12] : memref<256x128xf32, #tpu.memory_space<vmem>>, vector<256x128xf32>
    tpu.vector_store %arg6[%c0_11, %c0_12], %12 {strides = array<i32>} : memref<256x128xf32, #tpu.memory_space<vmem>>, vector<256x128xf32>,
    return
  }
  func.func @transform_0(%arg0: i32) -> (i32, i32) {
    %c0_i32 = arith.constant 0 : i32
    %c0_i32_0 = arith.constant 0 : i32
    return %arg0, %c0_i32 : i32, i32
  }
  func.func @transform_1(%arg0: i32) -> (i32, i32) {
    %c0_i32 = arith.constant 0 : i32
    %c0_i32_0 = arith.constant 0 : i32
    %c0_i32_1 = arith.constant 0 : i32
    return %c0_i32, %c0_i32_0 : i32, i32
  }
  func.func @transform_2(%arg0: i32) -> (i32, i32) {
    %c0_i32 = arith.constant 0 : i32
    %c0_i32_0 = arith.constant 0 : i32
    %c0_i32_1 = arith.constant 0 : i32
    return %c0_i32, %c0_i32_0 : i32, i32
  }
  func.func @transform_3(%arg0: i32) -> (i32, i32) {
    %c0_i32 = arith.constant 0 : i32
    %c0_i32_0 = arith.constant 0 : i32
    %c0_i32_1 = arith.constant 0 : i32
    return %c0_i32, %c0_i32_0 : i32, i32
  }
  func.func @transform_4(%arg0: i32) -> (i32, i32) {
    %c0_i32 = arith.constant 0 : i32
    %c0_i32_0 = arith.constant 0 : i32
    %c0_i32_1 = arith.constant 0 : i32
    return %c0_i32, %c0_i32_0 : i32, i32
  }
  func.func @transform_5(%arg0: i32) -> (i32, i32) {
    %c0_i32 = arith.constant 0 : i32
    %c0_i32_0 = arith.constant 0 : i32
    return %arg0, %c0_i32 : i32, i32
  }
}

</mosaic_0001>

<llo_original>
// kernel: net_forward.1
$region0: #{net_forward.1}
  #allocation0 [shape = 'u32[]', space=smem, size = 0x4, offset = 0x4, fixed_abs, tag = 'smem constant byte address 0x4 - core index']
  #allocation1 [shape = 'u32[72,128]{1,0:T(1,128)}', space=vmem, size = 0x9000, scoped, tag = 'internal scratch']
  %s0 = inlined_call_operand.vmem [shape: f32[256,784], index: 0, kind: input, shape index: {}]
  %s1 = inlined_call_operand.vmem [shape: f32[784,128], index: 1, kind: input, shape index: {}]
  %s2 = inlined_call_operand.vmem [shape: f32[1,128], index: 2, kind: input, shape index: {}]
  %s3 = inlined_call_operand.vmem [shape: f32[128,128], index: 3, kind: input, shape index: {}]
  %s4 = inlined_call_operand.vmem [shape: f32[1,128], index: 4, kind: input, shape index: {}]
  %s5 = inlined_call_operand.vmem [shape: f32[256,128], index: 5, kind: output, shape index: {}]
  %s6 = sld [smem:[#allocation0]]
  $region30: #{net_forward.1} parent=0
    _
  %s8 = ssub.s32 1, %s6
  %s9 = scalar_select 0, %s8, %s6
  // Predicated region
  $region2: #{net_forward.1} parent=0 // pred_check
    _
  $region3: #{net_forward.1} parent=0 // pred_check_branch
    %11 = sbr.rel (0) target = $region5
  $region4: #{net_forward.1} parent=0 // pred_region
    _
  $region5: #{net_forward.1} parent=0 // pred_fallthru
    _
  // Predicated region
  $region6: #{net_forward.1} parent=0 // pred_check
    _
  $region7: #{net_forward.1} parent=0 // pred_check_branch
    %13 = sbr.rel (0) target = $region9
  $region8: #{net_forward.1} parent=0 // pred_region
    _
  $region9: #{net_forward.1} parent=0 // pred_fallthru
    _
  // Predicated region
  $region10: #{net_forward.1} parent=0 // pred_check
    _
  $region11: #{net_forward.1} parent=0 // pred_check_branch
    %15 = sbr.rel (0) target = $region13
  $region12: #{net_forward.1} parent=0 // pred_region
    _
  $region13: #{net_forward.1} parent=0 // pred_fallthru
    _
  // Predicated region
  $region14: #{net_forward.1} parent=0 // pred_check
    _
  $region15: #{net_forward.1} parent=0 // pred_check_branch
    %17 = sbr.rel (0) target = $region17
  $region16: #{net_forward.1} parent=0 // pred_region
    _
  $region17: #{net_forward.1} parent=0 // pred_fallthru
    _
  // Predicated region
  $region18: #{net_forward.1} parent=0 // pred_check
    _
  $region19: #{net_forward.1} parent=0 // pred_check_branch
    %19 = sbr.rel (0) target = $region21
  $region20: #{net_forward.1} parent=0 // pred_region
    _
  $region21: #{net_forward.1} parent=0 // pred_fallthru
    _
  %v20 = vld [vmem:[%s0] sm:$0xff]
  %v21 = vld [vmem:[%s0 + $0x8] sm:$0xff]
  %v22 = vld [vmem:[%s0 + $0x10] sm:$0xff]
  %v23 = vld [vmem:[%s0 + $0x18] sm:$0xff]
  %v24 = vld [vmem:[%s0 + $0x20] sm:$0xff]
  %v25 = vld [vmem:[%s0 + $0x28] sm:$0xff]
  %v26 = vld [vmem:[%s0 + $0x30] sm:$0xff]
  %v27 = vld [vmem:[%s0 + $0x38] sm:$0xff]
  %v28 = vld [vmem:[%s0 + $0x40] sm:$0xff]
  %v29 = vld [vmem:[%s0 + $0x48] sm:$0xff]
  %v30 = vld [vmem:[%s0 + $0x50] sm:$0xff]
  %v31 = vld [vmem:[%s0 + $0x58] sm:$0xff]
  %v32 = vld [vmem:[%s0 + $0x60] sm:$0xff]
  %v33 = vld [vmem:[%s0 + $0x68] sm:$0xff]
  %v34 = vld [vmem:[%s0 + $0x70] sm:$0xff]
  %v35 = vld [vmem:[%s0 + $0x78] sm:$0xff]
  %v36 = vld [vmem:[%s0 + $0x80] sm:$0xff]
  %v37 = vld [vmem:[%s0 + $0x88] sm:$0xff]
  %v38 = vld [vmem:[%s0 + $0x90] sm:$0xff]
  %v39 = vld [vmem:[%s0 + $0x98] sm:$0xff]
  %v40 = vld [vmem:[%s0 + $0xa0] sm:$0xff]
  %v41 = vld [vmem:[%s0 + $0xa8] sm:$0xff]
  %v42 = vld [vmem:[%s0 + $0xb0] sm:$0xff]
  %v43 = vld [vmem:[%s0 + $0xb8] sm:$0xff]
  %v44 = vld [vmem:[%s0 + $0xc0] sm:$0xff]
  %v45 = vld [vmem:[%s0 + $0xc8] sm:$0xff]
  %v46 = vld [vmem:[%s0 + $0xd0] sm:$0xff]
  %v47 = vld [vmem:[%s0 + $0xd8] sm:$0xff]
  %v48 = vld [vmem:[%s0 + $0xe0] sm:$0xff]
  %v49 = vld [vmem:[%s0 + $0xe8] sm:$0xff]
  %v50 = vld [vmem:[%s0 + $0xf0] sm:$0xff]
  %v51 = vld [vmem:[%s0 + $0xf8] sm:$0xff]
  %v52 = vld [vmem:[%s0 + $0x100] sm:$0xff]
  %v53 = vld [vmem:[%s0 + $0x108] sm:$0xff]
  %v54 = vld [vmem:[%s0 + $0x110] sm:$0xff]
  %v55 = vld [vmem:[%s0 + $0x118] sm:$0xff]
  %v56 = vld [vmem:[%s0 + $0x120] sm:$0xff]
  %v57 = vld [vmem:[%s0 + $0x128] sm:$0xff]
  %v58 = vld [vmem:[%s0 + $0x130] sm:$0xff]
  %v59 = vld [vmem:[%s0 + $0x138] sm:$0xff]
  %v60 = vld [vmem:[%s0 + $0x140] sm:$0xff]
  %v61 = vld [vmem:[%s0 + $0x148] sm:$0xff]
  %v62 = vld [vmem:[%s0 + $0x150] sm:$0xff]
  %v63 = vld [vmem:[%s0 + $0x158] sm:$0xff]
  %v64 = vld [vmem:[%s0 + $0x160] sm:$0xff]
  %v65 = vld [vmem:[%s0 + $0x168] sm:$0xff]
  %v66 = vld [vmem:[%s0 + $0x170] sm:$0xff]
  %v67 = vld [vmem:[%s0 + $0x178] sm:$0xff]
  %v68 = vld [vmem:[%s0 + $0x180] sm:$0xff]
  %v69 = vld [vmem:[%s0 + $0x188] sm:$0xff]
  %v70 = vld [vmem:[%s0 + $0x190] sm:$0xff]
  %v71 = vld [vmem:[%s0 + $0x198] sm:$0xff]
  %v72 = vld [vmem:[%s0 + $0x1a0] sm:$0xff]
  %v73 = vld [vmem:[%s0 + $0x1a8] sm:$0xff]
  %v74 = vld [vmem:[%s0 + $0x1b0] sm:$0xff]
  %v75 = vld [vmem:[%s0 + $0x1b8] sm:$0xff]
  %v76 = vld [vmem:[%s0 + $0x1c0] sm:$0xff]
  %v77 = vld [vmem:[%s0 + $0x1c8] sm:$0xff]
  %v78 = vld [vmem:[%s0 + $0x1d0] sm:$0xff]
  %v79 = vld [vmem:[%s0 + $0x1d8] sm:$0xff]
  %v80 = vld [vmem:[%s0 + $0x1e0] sm:$0xff]
  %v81 = vld [vmem:[%s0 + $0x1e8] sm:$0xff]
  %v82 = vld [vmem:[%s0 + $0x1f0] sm:$0xff]
  %v83 = vld [vmem:[%s0 + $0x1f8] sm:$0xff]
  %v84 = vld [vmem:[%s0 + $0x200] sm:$0xff]
  %v85 = vld [vmem:[%s0 + $0x208] sm:$0xff]
  %v86 = vld [vmem:[%s0 + $0x210] sm:$0xff]
  %v87 = vld [vmem:[%s0 + $0x218] sm:$0xff]
  %v88 = vld [vmem:[%s0 + $0x220] sm:$0xff]
  %v89 = vld [vmem:[%s0 + $0x228] sm:$0xff]
  %v90 = vld [vmem:[%s0 + $0x230] sm:$0xff]
  %v91 = vld [vmem:[%s0 + $0x238] sm:$0xff]
  %v92 = vld [vmem:[%s0 + $0x240] sm:$0xff]
  %v93 = vld [vmem:[%s0 + $0x248] sm:$0xff]
  %v94 = vld [vmem:[%s0 + $0x250] sm:$0xff]
  %v95 = vld [vmem:[%s0 + $0x258] sm:$0xff]
  %v96 = vld [vmem:[%s0 + $0x260] sm:$0xff]
  %v97 = vld [vmem:[%s0 + $0x268] sm:$0xff]
  %v98 = vld [vmem:[%s0 + $0x270] sm:$0xff]
  %v99 = vld [vmem:[%s0 + $0x278] sm:$0xff]
  %v100 = vld [vmem:[%s0 + $0x280] sm:$0xff]
  %v101 = vld [vmem:[%s0 + $0x288] sm:$0xff]
  %v102 = vld [vmem:[%s0 + $0x290] sm:$0xff]
  %v103 = vld [vmem:[%s0 + $0x298] sm:$0xff]
  %v104 = vld [vmem:[%s0 + $0x2a0] sm:$0xff]
  %v105 = vld [vmem:[%s0 + $0x2a8] sm:$0xff]
  %v106 = vld [vmem:[%s0 + $0x2b0] sm:$0xff]
  %v107 = vld [vmem:[%s0 + $0x2b8] sm:$0xff]
  %v108 = vld [vmem:[%s0 + $0x2c0] sm:$0xff]
  %v109 = vld [vmem:[%s0 + $0x2c8] sm:$0xff]
  %v110 = vld [vmem:[%s0 + $0x2d0] sm:$0xff]
  %v111 = vld [vmem:[%s0 + $0x2d8] sm:$0xff]
  %v112 = vld [vmem:[%s0 + $0x2e0] sm:$0xff]
  %v113 = vld [vmem:[%s0 + $0x2e8] sm:$0xff]
  %v114 = vld [vmem:[%s0 + $0x2f0] sm:$0xff]
  %v115 = vld [vmem:[%s0 + $0x2f8] sm:$0xff]
  %v116 = vld [vmem:[%s0 + $0x300] sm:$0xff]
  %v117 = vld [vmem:[%s0 + $0x308] sm:$0xff]
  %v118 = vld [vmem:[%s0 + $0x310] sm:$0xff]
  %v119 = vld [vmem:[%s0 + $0x318] sm:$0xff]
  %v120 = vld [vmem:[%s0 + $0x320] sm:$0xff]
  %v121 = vld [vmem:[%s0 + $0x328] sm:$0xff]
  %v122 = vld [vmem:[%s0 + $0x330] sm:$0xff]
  %v123 = vld [vmem:[%s0 + $0x338] sm:$0xff]
  %v124 = vld [vmem:[%s0 + $0x340] sm:$0xff]
  %v125 = vld [vmem:[%s0 + $0x348] sm:$0xff]
  %v126 = vld [vmem:[%s0 + $0x350] sm:$0xff]
  %v127 = vld [vmem:[%s0 + $0x358] sm:$0xff]
  %v128 = vld [vmem:[%s0 + $0x360] sm:$0xff]
  %v129 = vld [vmem:[%s0 + $0x368] sm:$0xff]
  %v130 = vld [vmem:[%s0 + $0x370] sm:$0xff]
  %v131 = vld [vmem:[%s0 + $0x378] sm:$0xff]
  %v132 = vld [vmem:[%s0 + $0x380] sm:$0xff]
  %v133 = vld [vmem:[%s0 + $0x388] sm:$0xff]
  %v134 = vld [vmem:[%s0 + $0x390] sm:$0xff]
  %v135 = vld [vmem:[%s0 + $0x398] sm:$0xff]
  %v136 = vld [vmem:[%s0 + $0x3a0] sm:$0xff]
  %v137 = vld [vmem:[%s0 + $0x3a8] sm:$0xff]
  %v138 = vld [vmem:[%s0 + $0x3b0] sm:$0xff]
  %v139 = vld [vmem:[%s0 + $0x3b8] sm:$0xff]
  %v140 = vld [vmem:[%s0 + $0x3c0] sm:$0xff]
  %v141 = vld [vmem:[%s0 + $0x3c8] sm:$0xff]
  %v142 = vld [vmem:[%s0 + $0x3d0] sm:$0xff]
  %v143 = vld [vmem:[%s0 + $0x3d8] sm:$0xff]
  %v144 = vld [vmem:[%s0 + $0x3e0] sm:$0xff]
  %v145 = vld [vmem:[%s0 + $0x3e8] sm:$0xff]
  %v146 = vld [vmem:[%s0 + $0x3f0] sm:$0xff]
  %v147 = vld [vmem:[%s0 + $0x3f8] sm:$0xff]
  %v148 = vld [vmem:[%s0 + $0x400] sm:$0xff]
  %v149 = vld [vmem:[%s0 + $0x408] sm:$0xff]
  %v150 = vld [vmem:[%s0 + $0x410] sm:$0xff]
  %v151 = vld [vmem:[%s0 + $0x418] sm:$0xff]
  %v152 = vld [vmem:[%s0 + $0x420] sm:$0xff]
  %v153 = vld [vmem:[%s0 + $0x428] sm:$0xff]
  %v154 = vld [vmem:[%s0 + $0x430] sm:$0xff]
  %v155 = vld [vmem:[%s0 + $0x438] sm:$0xff]
  %v156 = vld [vmem:[%s0 + $0x440] sm:$0xff]
  %v157 = vld [vmem:[%s0 + $0x448] sm:$0xff]
  %v158 = vld [vmem:[%s0 + $0x450] sm:$0xff]
  %v159 = vld [vmem:[%s0 + $0x458] sm:$0xff]
  %v160 = vld [vmem:[%s0 + $0x460] sm:$0xff]
  %v161 = vld [vmem:[%s0 + $0x468] sm:$0xff]
  %v162 = vld [vmem:[%s0 + $0x470] sm:$0xff]
  %v163 = vld [vmem:[%s0 + $0x478] sm:$0xff]
  %v164 = vld [vmem:[%s0 + $0x480] sm:$0xff]
  %v165 = vld [vmem:[%s0 + $0x488] sm:$0xff]
  %v166 = vld [vmem:[%s0 + $0x490] sm:$0xff]
  %v167 = vld [vmem:[%s0 + $0x498] sm:$0xff]
  %v168 = vld [vmem:[%s0 + $0x4a0] sm:$0xff]
  %v169 = vld [vmem:[%s0 + $0x4a8] sm:$0xff]
  %v170 = vld [vmem:[%s0 + $0x4b0] sm:$0xff]
  %v171 = vld [vmem:[%s0 + $0x4b8] sm:$0xff]
  %v172 = vld [vmem:[%s0 + $0x4c0] sm:$0xff]
  %v173 = vld [vmem:[%s0 + $0x4c8] sm:$0xff]
  %v174 = vld [vmem:[%s0 + $0x4d0] sm:$0xff]
  %v175 = vld [vmem:[%s0 + $0x4d8] sm:$0xff]
  %v176 = vld [vmem:[%s0 + $0x4e0] sm:$0xff]
  %v177 = vld [vmem:[%s0 + $0x4e8] sm:$0xff]
  %v178 = vld [vmem:[%s0 + $0x4f0] sm:$0xff]
  %v179 = vld [vmem:[%s0 + $0x4f8] sm:$0xff]
  %v180 = vld [vmem:[%s0 + $0x500] sm:$0xff]
  %v181 = vld [vmem:[%s0 + $0x508] sm:$0xff]
  %v182 = vld [vmem:[%s0 + $0x510] sm:$0xff]
  %v183 = vld [vmem:[%s0 + $0x518] sm:$0xff]
  %v184 = vld [vmem:[%s0 + $0x520] sm:$0xff]
  %v185 = vld [vmem:[%s0 + $0x528] sm:$0xff]
  %v186 = vld [vmem:[%s0 + $0x530] sm:$0xff]
  %v187 = vld [vmem:[%s0 + $0x538] sm:$0xff]
  %v188 = vld [vmem:[%s0 + $0x540] sm:$0xff]
  %v189 = vld [vmem:[%s0 + $0x548] sm:$0xff]
  %v190 = vld [vmem:[%s0 + $0x550] sm:$0xff]
  %v191 = vld [vmem:[%s0 + $0x558] sm:$0xff]
  %v192 = vld [vmem:[%s0 + $0x560] sm:$0xff]
  %v193 = vld [vmem:[%s0 + $0x568] sm:$0xff]
  %v194 = vld [vmem:[%s0 + $0x570] sm:$0xff]
  %v195 = vld [vmem:[%s0 + $0x578] sm:$0xff]
  %v196 = vld [vmem:[%s0 + $0x580] sm:$0xff]
  %v197 = vld [vmem:[%s0 + $0x588] sm:$0xff]
  %v198 = vld [vmem:[%s0 + $0x590] sm:$0xff]
  %v199 = vld [vmem:[%s0 + $0x598] sm:$0xff]
  %v200 = vld [vmem:[%s0 + $0x5a0] sm:$0xff]
  %v201 = vld [vmem:[%s0 + $0x5a8] sm:$0xff]
  %v202 = vld [vmem:[%s0 + $0x5b0] sm:$0xff]
  %v203 = vld [vmem:[%s0 + $0x5b8] sm:$0xff]
  %v204 = vld [vmem:[%s0 + $0x5c0] sm:$0xff]
  %v205 = vld [vmem:[%s0 + $0x5c8] sm:$0xff]
  %v206 = vld [vmem:[%s0 + $0x5d0] sm:$0xff]
  %v207 = vld [vmem:[%s0 + $0x5d8] sm:$0xff]
  %v208 = vld [vmem:[%s0 + $0x5e0] sm:$0xff]
  %v209 = vld [vmem:[%s0 + $0x5e8] sm:$0xff]
  %v210 = vld [vmem:[%s0 + $0x5f0] sm:$0xff]
  %v211 = vld [vmem:[%s0 + $0x5f8] sm:$0xff]
  %v212 = vld [vmem:[%s0 + $0x600] sm:$0xff]
  %v213 = vld [vmem:[%s0 + $0x608] sm:$0xff]
  %v214 = vld [vmem:[%s0 + $0x610] sm:$0xff]
  %v215 = vld [vmem:[%s0 + $0x618] sm:$0xff]
  %v216 = vld [vmem:[%s0 + $0x620] sm:$0xff]
  %v217 = vld [vmem:[%s0 + $0x628] sm:$0xff]
  %v218 = vld [vmem:[%s0 + $0x630] sm:$0xff]
  %v219 = vld [vmem:[%s0 + $0x638] sm:$0xff]
  %v220 = vld [vmem:[%s0 + $0x640] sm:$0xff]
  %v221 = vld [vmem:[%s0 + $0x648] sm:$0xff]
  %v222 = vld [vmem:[%s0 + $0x650] sm:$0xff]
  %v223 = vld [vmem:[%s0 + $0x658] sm:$0xff]
  %v224 = vld [vmem:[%s0 + $0x660] sm:$0xff]
  %v225 = vld [vmem:[%s0 + $0x668] sm:$0xff]
  %v226 = vld [vmem:[%s0 + $0x670] sm:$0xff]
  %v227 = vld [vmem:[%s0 + $0x678] sm:$0xff]
  %v228 = vld [vmem:[%s0 + $0x680] sm:$0xff]
  %v229 = vld [vmem:[%s0 + $0x688] sm:$0xff]
  %v230 = vld [vmem:[%s0 + $0x690] sm:$0xff]
  %v231 = vld [vmem:[%s0 + $0x698] sm:$0xff]
  %v232 = vld [vmem:[%s0 + $0x6a0] sm:$0xff]
  %v233 = vld [vmem:[%s0 + $0x6a8] sm:$0xff]
  %v234 = vld [vmem:[%s0 + $0x6b0] sm:$0xff]
  %v235 = vld [vmem:[%s0 + $0x6b8] sm:$0xff]
  %v236 = vld [vmem:[%s0 + $0x6c0] sm:$0xff]
  %v237 = vld [vmem:[%s0 + $0x6c8] sm:$0xff]
  %v238 = vld [vmem:[%s0 + $0x6d0] sm:$0xff]
  %v239 = vld [vmem:[%s0 + $0x6d8] sm:$0xff]
  %v240 = vld [vmem:[%s0 + $0x6e0] sm:$0xff]
  %v241 = vld [vmem:[%s0 + $0x6e8] sm:$0xff]
  %v242 = vld [vmem:[%s0 + $0x6f0] sm:$0xff]
  %v243 = vld [vmem:[%s0 + $0x6f8] sm:$0xff]
  %v244 = vld [vmem:[%s1] sm:$0xff]
  %v245 = vld [vmem:[%s1 + $0x8] sm:$0xff]
  %v246 = vld [vmem:[%s1 + $0x10] sm:$0xff]
  %v247 = vld [vmem:[%s1 + $0x18] sm:$0xff]
  %v248 = vld [vmem:[%s1 + $0x20] sm:$0xff]
  %v249 = vld [vmem:[%s1 + $0x28] sm:$0xff]
  %v250 = vld [vmem:[%s1 + $0x30] sm:$0xff]
  %v251 = vld [vmem:[%s1 + $0x38] sm:$0xff]
  %v252 = vld [vmem:[%s1 + $0x40] sm:$0xff]
  %v253 = vld [vmem:[%s1 + $0x48] sm:$0xff]
  %v254 = vld [vmem:[%s1 + $0x50] sm:$0xff]
  %v255 = vld [vmem:[%s1 + $0x58] sm:$0xff]
  %v256 = vld [vmem:[%s1 + $0x60] sm:$0xff]
  %v257 = vld [vmem:[%s1 + $0x68] sm:$0xff]
  %v258 = vld [vmem:[%s1 + $0x70] sm:$0xff]
  %v259 = vld [vmem:[%s1 + $0x78] sm:$0xff]
  %v260 = vld [vmem:[%s1 + $0x80] sm:$0xff]
  %v261 = vld [vmem:[%s1 + $0x88] sm:$0xff]
  %v262 = vld [vmem:[%s1 + $0x90] sm:$0xff]
  %v263 = vld [vmem:[%s1 + $0x98] sm:$0xff]
  %v264 = vld [vmem:[%s1 + $0xa0] sm:$0xff]
  %v265 = vld [vmem:[%s1 + $0xa8] sm:$0xff]
  %v266 = vld [vmem:[%s1 + $0xb0] sm:$0xff]
  %v267 = vld [vmem:[%s1 + $0xb8] sm:$0xff]
  %v268 = vld [vmem:[%s1 + $0xc0] sm:$0xff]
  %v269 = vld [vmem:[%s1 + $0xc8] sm:$0xff]
  %v270 = vld [vmem:[%s1 + $0xd0] sm:$0xff]
  %v271 = vld [vmem:[%s1 + $0xd8] sm:$0xff]
  %v272 = vld [vmem:[%s1 + $0xe0] sm:$0xff]
  %v273 = vld [vmem:[%s1 + $0xe8] sm:$0xff]
  %v274 = vld [vmem:[%s1 + $0xf0] sm:$0xff]
  %v275 = vld [vmem:[%s1 + $0xf8] sm:$0xff]
  %v276 = vld [vmem:[%s1 + $0x100] sm:$0xff]
  %v277 = vld [vmem:[%s1 + $0x108] sm:$0xff]
  %v278 = vld [vmem:[%s1 + $0x110] sm:$0xff]
  %v279 = vld [vmem:[%s1 + $0x118] sm:$0xff]
  %v280 = vld [vmem:[%s1 + $0x120] sm:$0xff]
  %v281 = vld [vmem:[%s1 + $0x128] sm:$0xff]
  %v282 = vld [vmem:[%s1 + $0x130] sm:$0xff]
  %v283 = vld [vmem:[%s1 + $0x138] sm:$0xff]
  %v284 = vld [vmem:[%s1 + $0x140] sm:$0xff]
  %v285 = vld [vmem:[%s1 + $0x148] sm:$0xff]
  %v286 = vld [vmem:[%s1 + $0x150] sm:$0xff]
  %v287 = vld [vmem:[%s1 + $0x158] sm:$0xff]
  %v288 = vld [vmem:[%s1 + $0x160] sm:$0xff]
  %v289 = vld [vmem:[%s1 + $0x168] sm:$0xff]
  %v290 = vld [vmem:[%s1 + $0x170] sm:$0xff]
  %v291 = vld [vmem:[%s1 + $0x178] sm:$0xff]
  %v292 = vld [vmem:[%s1 + $0x180] sm:$0xff]
  %v293 = vld [vmem:[%s1 + $0x188] sm:$0xff]
  %v294 = vld [vmem:[%s1 + $0x190] sm:$0xff]
  %v295 = vld [vmem:[%s1 + $0x198] sm:$0xff]
  %v296 = vld [vmem:[%s1 + $0x1a0] sm:$0xff]
  %v297 = vld [vmem:[%s1 + $0x1a8] sm:$0xff]
  %v298 = vld [vmem:[%s1 + $0x1b0] sm:$0xff]
  %v299 = vld [vmem:[%s1 + $0x1b8] sm:$0xff]
  %v300 = vld [vmem:[%s1 + $0x1c0] sm:$0xff]
  %v301 = vld [vmem:[%s1 + $0x1c8] sm:$0xff]
  %v302 = vld [vmem:[%s1 + $0x1d0] sm:$0xff]
  %v303 = vld [vmem:[%s1 + $0x1d8] sm:$0xff]
  %v304 = vld [vmem:[%s1 + $0x1e0] sm:$0xff]
  %v305 = vld [vmem:[%s1 + $0x1e8] sm:$0xff]
  %v306 = vld [vmem:[%s1 + $0x1f0] sm:$0xff]
  %v307 = vld [vmem:[%s1 + $0x1f8] sm:$0xff]
  %v308 = vld [vmem:[%s1 + $0x200] sm:$0xff]
  %v309 = vld [vmem:[%s1 + $0x208] sm:$0xff]
  %v310 = vld [vmem:[%s1 + $0x210] sm:$0xff]
  %v311 = vld [vmem:[%s1 + $0x218] sm:$0xff]
  %v312 = vld [vmem:[%s1 + $0x220] sm:$0xff]
  %v313 = vld [vmem:[%s1 + $0x228] sm:$0xff]
  %v314 = vld [vmem:[%s1 + $0x230] sm:$0xff]
  %v315 = vld [vmem:[%s1 + $0x238] sm:$0xff]
  %v316 = vld [vmem:[%s1 + $0x240] sm:$0xff]
  %v317 = vld [vmem:[%s1 + $0x248] sm:$0xff]
  %v318 = vld [vmem:[%s1 + $0x250] sm:$0xff]
  %v319 = vld [vmem:[%s1 + $0x258] sm:$0xff]
  %v320 = vld [vmem:[%s1 + $0x260] sm:$0xff]
  %v321 = vld [vmem:[%s1 + $0x268] sm:$0xff]
  %v322 = vld [vmem:[%s1 + $0x270] sm:$0xff]
  %v323 = vld [vmem:[%s1 + $0x278] sm:$0xff]
  %v324 = vld [vmem:[%s1 + $0x280] sm:$0xff]
  %v325 = vld [vmem:[%s1 + $0x288] sm:$0xff]
  %v326 = vld [vmem:[%s1 + $0x290] sm:$0xff]
  %v327 = vld [vmem:[%s1 + $0x298] sm:$0xff]
  %v328 = vld [vmem:[%s1 + $0x2a0] sm:$0xff]
  %v329 = vld [vmem:[%s1 + $0x2a8] sm:$0xff]
  %v330 = vld [vmem:[%s1 + $0x2b0] sm:$0xff]
  %v331 = vld [vmem:[%s1 + $0x2b8] sm:$0xff]
  %v332 = vld [vmem:[%s1 + $0x2c0] sm:$0xff]
  %v333 = vld [vmem:[%s1 + $0x2c8] sm:$0xff]
  %v334 = vld [vmem:[%s1 + $0x2d0] sm:$0xff]
  %v335 = vld [vmem:[%s1 + $0x2d8] sm:$0xff]
  %v336 = vld [vmem:[%s1 + $0x2e0] sm:$0xff]
  %v337 = vld [vmem:[%s1 + $0x2e8] sm:$0xff]
  %v338 = vld [vmem:[%s1 + $0x2f0] sm:$0xff]
  %v339 = vld [vmem:[%s1 + $0x2f8] sm:$0xff]
  %v340 = vld [vmem:[%s1 + $0x300] sm:$0xff]
  %v341 = vld [vmem:[%s1 + $0x308] sm:$0xff]
  %v342 = vld [vmem:[%s2] sm:$0x1]
  %v344 = vperm.slane %v342, 0
  %vm346 = vcmask 130048
  %v348 = vsel %vm346, %v26, 0
  %v351 = vsel %vm346, %v33, 0
  %v354 = vsel %vm346, %v40, 0
  %v357 = vsel %vm346, %v47, 0
  %v360 = vsel %vm346, %v54, 0
  %v363 = vsel %vm346, %v61, 0
  %v366 = vsel %vm346, %v68, 0
  %v369 = vsel %vm346, %v75, 0
  %v372 = vsel %vm346, %v82, 0
  %v375 = vsel %vm346, %v89, 0
  %v378 = vsel %vm346, %v96, 0
  %v381 = vsel %vm346, %v103, 0
  %v384 = vsel %vm346, %v110, 0
  %v387 = vsel %vm346, %v117, 0
  %v390 = vsel %vm346, %v124, 0
  %v393 = vsel %vm346, %v131, 0
  %v396 = vsel %vm346, %v138, 0
  %v399 = vsel %vm346, %v145, 0
  %v402 = vsel %vm346, %v152, 0
  %v405 = vsel %vm346, %v159, 0
  %v408 = vsel %vm346, %v166, 0
  %v411 = vsel %vm346, %v173, 0
  %v414 = vsel %vm346, %v180, 0
  %v417 = vsel %vm346, %v187, 0
  %v420 = vsel %vm346, %v194, 0
  %v423 = vsel %vm346, %v201, 0
  %v426 = vsel %vm346, %v208, 0
  %v429 = vsel %vm346, %v215, 0
  %v432 = vsel %vm346, %v222, 0
  %v435 = vsel %vm346, %v229, 0
  %v438 = vsel %vm346, %v236, 0
  %v441 = vsel %vm346, %v243, 0
  %443 = vmatpush.msra.mxu0 %v259
  %444 = vmatpush.msra.mxu0 %v258
  %445 = vmatpush.msra.mxu0 %v257
  %446 = vmatpush.msra.mxu0 %v256
  %447 = vmatpush.msra.mxu0 %v255
  %448 = vmatpush.msra.mxu0 %v254
  %449 = vmatpush.msra.mxu0 %v253
  %450 = vmatpush.msra.mxu0 %v252
  %451 = vmatpush.msra.mxu0 %v251
  %452 = vmatpush.msra.mxu0 %v250
  %453 = vmatpush.msra.mxu0 %v249
  %454 = vmatpush.msra.mxu0 %v248
  %455 = vmatpush.msra.mxu0 %v247
  %456 = vmatpush.msra.mxu0 %v246
  %457 = vmatpush.msra.mxu0 %v245
  %458 = vmatpush.msra.mxu0 %v244
  %459 = vmatmul.f32.gmra.mxu0 %v20
  %v460 = vpop.f32.mrf.mxu0
  %v461 = vadd.f32 %v344, %v460
  %462 = vmatmul.f32.gmra.mxu0 %v27
  %v463 = vpop.f32.mrf.mxu0
  %v464 = vadd.f32 %v344, %v463
  %465 = vmatmul.f32.gmra.mxu0 %v34
  %v466 = vpop.f32.mrf.mxu0
  %v467 = vadd.f32 %v344, %v466
  %468 = vmatmul.f32.gmra.mxu0 %v41
  %v469 = vpop.f32.mrf.mxu0
  %v470 = vadd.f32 %v344, %v469
  %471 = vmatmul.f32.gmra.mxu0 %v48
  %v472 = vpop.f32.mrf.mxu0
  %v473 = vadd.f32 %v344, %v472
  %474 = vmatmul.f32.gmra.mxu0 %v55
  %v475 = vpop.f32.mrf.mxu0
  %v476 = vadd.f32 %v344, %v475
  %477 = vmatmul.f32.gmra.mxu0 %v62
  %v478 = vpop.f32.mrf.mxu0
  %v479 = vadd.f32 %v344, %v478
  %480 = vmatmul.f32.gmra.mxu0 %v69
  %v481 = vpop.f32.mrf.mxu0
  %v482 = vadd.f32 %v344, %v481
  %483 = vmatmul.f32.gmra.mxu0 %v76
  %v484 = vpop.f32.mrf.mxu0
  %v485 = vadd.f32 %v344, %v484
  %486 = vmatmul.f32.gmra.mxu0 %v83
  %v487 = vpop.f32.mrf.mxu0
  %v488 = vadd.f32 %v344, %v487
  %489 = vmatmul.f32.gmra.mxu0 %v90
  %v490 = vpop.f32.mrf.mxu0
  %v491 = vadd.f32 %v344, %v490
  %492 = vmatmul.f32.gmra.mxu0 %v97
  %v493 = vpop.f32.mrf.mxu0
  %v494 = vadd.f32 %v344, %v493
  %495 = vmatmul.f32.gmra.mxu0 %v104
  %v496 = vpop.f32.mrf.mxu0
  %v497 = vadd.f32 %v344, %v496
  %498 = vmatmul.f32.gmra.mxu0 %v111
  %v499 = vpop.f32.mrf.mxu0
  %v500 = vadd.f32 %v344, %v499
  %501 = vmatmul.f32.gmra.mxu0 %v118
  %v502 = vpop.f32.mrf.mxu0
  %v503 = vadd.f32 %v344, %v502
  %504 = vmatmul.f32.gmra.mxu0 %v125
  %v505 = vpop.f32.mrf.mxu0
  %v506 = vadd.f32 %v344, %v505
  %507 = vmatmul.f32.gmra.mxu0 %v132
  %v508 = vpop.f32.mrf.mxu0
  %v509 = vadd.f32 %v344, %v508
  %510 = vmatmul.f32.gmra.mxu0 %v139
  %v511 = vpop.f32.mrf.mxu0
  %v512 = vadd.f32 %v344, %v511
  %513 = vmatmul.f32.gmra.mxu0 %v146
  %v514 = vpop.f32.mrf.mxu0
  %v515 = vadd.f32 %v344, %v514
  %516 = vmatmul.f32.gmra.mxu0 %v153
  %v517 = vpop.f32.mrf.mxu0
  %v518 = vadd.f32 %v344, %v517
  %519 = vmatmul.f32.gmra.mxu0 %v160
  %v520 = vpop.f32.mrf.mxu0
  %v521 = vadd.f32 %v344, %v520
  %522 = vmatmul.f32.gmra.mxu0 %v167
  %v523 = vpop.f32.mrf.mxu0
  %v524 = vadd.f32 %v344, %v523
  %525 = vmatmul.f32.gmra.mxu0 %v174
  %v526 = vpop.f32.mrf.mxu0
  %v527 = vadd.f32 %v344, %v526
  %528 = vmatmul.f32.gmra.mxu0 %v181
  %v529 = vpop.f32.mrf.mxu0
  %v530 = vadd.f32 %v344, %v529
  %531 = vmatmul.f32.gmra.mxu0 %v188
  %v532 = vpop.f32.mrf.mxu0
  %v533 = vadd.f32 %v344, %v532
  %534 = vmatmul.f32.gmra.mxu0 %v195
  %v535 = vpop.f32.mrf.mxu0
  %v536 = vadd.f32 %v344, %v535
  %537 = vmatmul.f32.gmra.mxu0 %v202
  %v538 = vpop.f32.mrf.mxu0
  %v539 = vadd.f32 %v344, %v538
  %540 = vmatmul.f32.gmra.mxu0 %v209
  %v541 = vpop.f32.mrf.mxu0
  %v542 = vadd.f32 %v344, %v541
  %543 = vmatmul.f32.gmra.mxu0 %v216
  %v544 = vpop.f32.mrf.mxu0
  %v545 = vadd.f32 %v344, %v544
  %546 = vmatmul.f32.gmra.mxu0 %v223
  %v547 = vpop.f32.mrf.mxu0
  %v548 = vadd.f32 %v344, %v547
  %549 = vmatmul.f32.gmra.mxu0 %v230
  %v550 = vpop.f32.mrf.mxu0
  %v551 = vadd.f32 %v344, %v550
  %552 = vmatmul.f32.gmra.mxu0 %v237
  %v553 = vpop.f32.mrf.mxu0
  %v554 = vadd.f32 %v344, %v553
  %555 = vdwg.mxu0
  %556 = vmatpush.msra.mxu0 %v275
  %557 = vmatpush.msra.mxu0 %v274
  %558 = vmatpush.msra.mxu0 %v273
  %559 = vmatpush.msra.mxu0 %v272
  %560 = vmatpush.msra.mxu0 %v271
  %561 = vmatpush.msra.mxu0 %v270
  %562 = vmatpush.msra.mxu0 %v269
  %563 = vmatpush.msra.mxu0 %v268
  %564 = vmatpush.msra.mxu0 %v267
  %565 = vmatpush.msra.mxu0 %v266
  %566 = vmatpush.msra.mxu0 %v265
  %567 = vmatpush.msra.mxu0 %v264
  %568 = vmatpush.msra.mxu0 %v263
  %569 = vmatpush.msra.mxu0 %v262
  %570 = vmatpush.msra.mxu0 %v261
  %571 = vmatpush.msra.mxu0 %v260
  %572 = vmatmul.f32.gmra.mxu0 %v21
  %v573 = vpop.f32.mrf.mxu0
  %v574 = vadd.f32 %v461, %v573
  %575 = vmatmul.f32.gmra.mxu0 %v28
  %v576 = vpop.f32.mrf.mxu0
  %v577 = vadd.f32 %v464, %v576
  %578 = vmatmul.f32.gmra.mxu0 %v35
  %v579 = vpop.f32.mrf.mxu0
  %v580 = vadd.f32 %v467, %v579
  %581 = vmatmul.f32.gmra.mxu0 %v42
  %v582 = vpop.f32.mrf.mxu0
  %v583 = vadd.f32 %v470, %v582
  %584 = vmatmul.f32.gmra.mxu0 %v49
  %v585 = vpop.f32.mrf.mxu0
  %v586 = vadd.f32 %v473, %v585
  %587 = vmatmul.f32.gmra.mxu0 %v56
  %v588 = vpop.f32.mrf.mxu0
  %v589 = vadd.f32 %v476, %v588
  %590 = vmatmul.f32.gmra.mxu0 %v63
  %v591 = vpop.f32.mrf.mxu0
  %v592 = vadd.f32 %v479, %v591
  %593 = vmatmul.f32.gmra.mxu0 %v70
  %v594 = vpop.f32.mrf.mxu0
  %v595 = vadd.f32 %v482, %v594
  %596 = vmatmul.f32.gmra.mxu0 %v77
  %v597 = vpop.f32.mrf.mxu0
  %v598 = vadd.f32 %v485, %v597
  %599 = vmatmul.f32.gmra.mxu0 %v84
  %v600 = vpop.f32.mrf.mxu0
  %v601 = vadd.f32 %v488, %v600
  %602 = vmatmul.f32.gmra.mxu0 %v91
  %v603 = vpop.f32.mrf.mxu0
  %v604 = vadd.f32 %v491, %v603
  %605 = vmatmul.f32.gmra.mxu0 %v98
  %v606 = vpop.f32.mrf.mxu0
  %v607 = vadd.f32 %v494, %v606
  %608 = vmatmul.f32.gmra.mxu0 %v105
  %v609 = vpop.f32.mrf.mxu0
  %v610 = vadd.f32 %v497, %v609
  %611 = vmatmul.f32.gmra.mxu0 %v112
  %v612 = vpop.f32.mrf.mxu0
  %v613 = vadd.f32 %v500, %v612
  %614 = vmatmul.f32.gmra.mxu0 %v119
  %v615 = vpop.f32.mrf.mxu0
  %v616 = vadd.f32 %v503, %v615
  %617 = vmatmul.f32.gmra.mxu0 %v126
  %v618 = vpop.f32.mrf.mxu0
  %v619 = vadd.f32 %v506, %v618
  %620 = vmatmul.f32.gmra.mxu0 %v133
  %v621 = vpop.f32.mrf.mxu0
  %v622 = vadd.f32 %v509, %v621
  %623 = vmatmul.f32.gmra.mxu0 %v140
  %v624 = vpop.f32.mrf.mxu0
  %v625 = vadd.f32 %v512, %v624
  %626 = vmatmul.f32.gmra.mxu0 %v147
  %v627 = vpop.f32.mrf.mxu0
  %v628 = vadd.f32 %v515, %v627
  %629 = vmatmul.f32.gmra.mxu0 %v154
  %v630 = vpop.f32.mrf.mxu0
  %v631 = vadd.f32 %v518, %v630
  %632 = vmatmul.f32.gmra.mxu0 %v161
  %v633 = vpop.f32.mrf.mxu0
  %v634 = vadd.f32 %v521, %v633
  %635 = vmatmul.f32.gmra.mxu0 %v168
  %v636 = vpop.f32.mrf.mxu0
  %v637 = vadd.f32 %v524, %v636
  %638 = vmatmul.f32.gmra.mxu0 %v175
  %v639 = vpop.f32.mrf.mxu0
  %v640 = vadd.f32 %v527, %v639
  %641 = vmatmul.f32.gmra.mxu0 %v182
  %v642 = vpop.f32.mrf.mxu0
  %v643 = vadd.f32 %v530, %v642
  %644 = vmatmul.f32.gmra.mxu0 %v189
  %v645 = vpop.f32.mrf.mxu0
  %v646 = vadd.f32 %v533, %v645
  %647 = vmatmul.f32.gmra.mxu0 %v196
  %v648 = vpop.f32.mrf.mxu0
  %v649 = vadd.f32 %v536, %v648
  %650 = vmatmul.f32.gmra.mxu0 %v203
  %v651 = vpop.f32.mrf.mxu0
  %v652 = vadd.f32 %v539, %v651
  %653 = vmatmul.f32.gmra.mxu0 %v210
  %v654 = vpop.f32.mrf.mxu0
  %v655 = vadd.f32 %v542, %v654
  %656 = vmatmul.f32.gmra.mxu0 %v217
  %v657 = vpop.f32.mrf.mxu0
  %v658 = vadd.f32 %v545, %v657
  %659 = vmatmul.f32.gmra.mxu0 %v224
  %v660 = vpop.f32.mrf.mxu0
  %v661 = vadd.f32 %v548, %v660
  %662 = vmatmul.f32.gmra.mxu0 %v231
  %v663 = vpop.f32.mrf.mxu0
  %v664 = vadd.f32 %v551, %v663
  %665 = vmatmul.f32.gmra.mxu0 %v238
  %v666 = vpop.f32.mrf.mxu0
  %v667 = vadd.f32 %v554, %v666
  %668 = vdwg.mxu0
  %669 = vmatpush.msra.mxu0 %v291
  %670 = vmatpush.msra.mxu0 %v290
  %671 = vmatpush.msra.mxu0 %v289
  %672 = vmatpush.msra.mxu0 %v288
  %673 = vmatpush.msra.mxu0 %v287
  %674 = vmatpush.msra.mxu0 %v286
  %675 = vmatpush.msra.mxu0 %v285
  %676 = vmatpush.msra.mxu0 %v284
  %677 = vmatpush.msra.mxu0 %v283
  %678 = vmatpush.msra.mxu0 %v282
  %679 = vmatpush.msra.mxu0 %v281
  %680 = vmatpush.msra.mxu0 %v280
  %681 = vmatpush.msra.mxu0 %v279
  %682 = vmatpush.msra.mxu0 %v278
  %683 = vmatpush.msra.mxu0 %v277
  %684 = vmatpush.msra.mxu0 %v276
  %685 = vmatmul.f32.gmra.mxu0 %v22
  %v686 = vpop.f32.mrf.mxu0
  %v687 = vadd.f32 %v574, %v686
  %688 = vmatmul.f32.gmra.mxu0 %v29
  %v689 = vpop.f32.mrf.mxu0
  %v690 = vadd.f32 %v577, %v689
  %691 = vmatmul.f32.gmra.mxu0 %v36
  %v692 = vpop.f32.mrf.mxu0
  %v693 = vadd.f32 %v580, %v692
  %694 = vmatmul.f32.gmra.mxu0 %v43
  %v695 = vpop.f32.mrf.mxu0
  %v696 = vadd.f32 %v583, %v695
  %697 = vmatmul.f32.gmra.mxu0 %v50
  %v698 = vpop.f32.mrf.mxu0
  %v699 = vadd.f32 %v586, %v698
  %700 = vmatmul.f32.gmra.mxu0 %v57
  %v701 = vpop.f32.mrf.mxu0
  %v702 = vadd.f32 %v589, %v701
  %703 = vmatmul.f32.gmra.mxu0 %v64
  %v704 = vpop.f32.mrf.mxu0
  %v705 = vadd.f32 %v592, %v704
  %706 = vmatmul.f32.gmra.mxu0 %v71
  %v707 = vpop.f32.mrf.mxu0
  %v708 = vadd.f32 %v595, %v707
  %709 = vmatmul.f32.gmra.mxu0 %v78
  %v710 = vpop.f32.mrf.mxu0
  %v711 = vadd.f32 %v598, %v710
  %712 = vmatmul.f32.gmra.mxu0 %v85
  %v713 = vpop.f32.mrf.mxu0
  %v714 = vadd.f32 %v601, %v713
  %715 = vmatmul.f32.gmra.mxu0 %v92
  %v716 = vpop.f32.mrf.mxu0
  %v717 = vadd.f32 %v604, %v716
  %718 = vmatmul.f32.gmra.mxu0 %v99
  %v719 = vpop.f32.mrf.mxu0
  %v720 = vadd.f32 %v607, %v719
  %721 = vmatmul.f32.gmra.mxu0 %v106
  %v722 = vpop.f32.mrf.mxu0
  %v723 = vadd.f32 %v610, %v722
  %724 = vmatmul.f32.gmra.mxu0 %v113
  %v725 = vpop.f32.mrf.mxu0
  %v726 = vadd.f32 %v613, %v725
  %727 = vmatmul.f32.gmra.mxu0 %v120
  %v728 = vpop.f32.mrf.mxu0
  %v729 = vadd.f32 %v616, %v728
  %730 = vmatmul.f32.gmra.mxu0 %v127
  %v731 = vpop.f32.mrf.mxu0
  %v732 = vadd.f32 %v619, %v731
  %733 = vmatmul.f32.gmra.mxu0 %v134
  %v734 = vpop.f32.mrf.mxu0
  %v735 = vadd.f32 %v622, %v734
  %736 = vmatmul.f32.gmra.mxu0 %v141
  %v737 = vpop.f32.mrf.mxu0
  %v738 = vadd.f32 %v625, %v737
  %739 = vmatmul.f32.gmra.mxu0 %v148
  %v740 = vpop.f32.mrf.mxu0
  %v741 = vadd.f32 %v628, %v740
  %742 = vmatmul.f32.gmra.mxu0 %v155
  %v743 = vpop.f32.mrf.mxu0
  %v744 = vadd.f32 %v631, %v743
  %745 = vmatmul.f32.gmra.mxu0 %v162
  %v746 = vpop.f32.mrf.mxu0
  %v747 = vadd.f32 %v634, %v746
  %748 = vmatmul.f32.gmra.mxu0 %v169
  %v749 = vpop.f32.mrf.mxu0
  %v750 = vadd.f32 %v637, %v749
  %751 = vmatmul.f32.gmra.mxu0 %v176
  %v752 = vpop.f32.mrf.mxu0
  %v753 = vadd.f32 %v640, %v752
  %754 = vmatmul.f32.gmra.mxu0 %v183
  %v755 = vpop.f32.mrf.mxu0
  %v756 = vadd.f32 %v643, %v755
  %757 = vmatmul.f32.gmra.mxu0 %v190
  %v758 = vpop.f32.mrf.mxu0
  %v759 = vadd.f32 %v646, %v758
  %760 = vmatmul.f32.gmra.mxu0 %v197
  %v761 = vpop.f32.mrf.mxu0
  %v762 = vadd.f32 %v649, %v761
  %763 = vmatmul.f32.gmra.mxu0 %v204
  %v764 = vpop.f32.mrf.mxu0
  %v765 = vadd.f32 %v652, %v764
  %766 = vmatmul.f32.gmra.mxu0 %v211
  %v767 = vpop.f32.mrf.mxu0
  %v768 = vadd.f32 %v655, %v767
  %769 = vmatmul.f32.gmra.mxu0 %v218
  %v770 = vpop.f32.mrf.mxu0
  %v771 = vadd.f32 %v658, %v770
  %772 = vmatmul.f32.gmra.mxu0 %v225
  %v773 = vpop.f32.mrf.mxu0
  %v774 = vadd.f32 %v661, %v773
  %775 = vmatmul.f32.gmra.mxu0 %v232
  %v776 = vpop.f32.mrf.mxu0
  %v777 = vadd.f32 %v664, %v776
  %778 = vmatmul.f32.gmra.mxu0 %v239
  %v779 = vpop.f32.mrf.mxu0
  %v780 = vadd.f32 %v667, %v779
  %781 = vdwg.mxu0
  %782 = vmatpush.msra.mxu0 %v307
  %783 = vmatpush.msra.mxu0 %v306
  %784 = vmatpush.msra.mxu0 %v305
  %785 = vmatpush.msra.mxu0 %v304
  %786 = vmatpush.msra.mxu0 %v303
  %787 = vmatpush.msra.mxu0 %v302
  %788 = vmatpush.msra.mxu0 %v301
  %789 = vmatpush.msra.mxu0 %v300
  %790 = vmatpush.msra.mxu0 %v299
  %791 = vmatpush.msra.mxu0 %v298
  %792 = vmatpush.msra.mxu0 %v297
  %793 = vmatpush.msra.mxu0 %v296
  %794 = vmatpush.msra.mxu0 %v295
  %795 = vmatpush.msra.mxu0 %v294
  %796 = vmatpush.msra.mxu0 %v293
  %797 = vmatpush.msra.mxu0 %v292
  %798 = vmatmul.f32.gmra.mxu0 %v23
  %v799 = vpop.f32.mrf.mxu0
  %v800 = vadd.f32 %v687, %v799
  %801 = vmatmul.f32.gmra.mxu0 %v30
  %v802 = vpop.f32.mrf.mxu0
  %v803 = vadd.f32 %v690, %v802
  %804 = vmatmul.f32.gmra.mxu0 %v37
  %v805 = vpop.f32.mrf.mxu0
  %v806 = vadd.f32 %v693, %v805
  %807 = vmatmul.f32.gmra.mxu0 %v44
  %v808 = vpop.f32.mrf.mxu0
  %v809 = vadd.f32 %v696, %v808
  %810 = vmatmul.f32.gmra.mxu0 %v51
  %v811 = vpop.f32.mrf.mxu0
  %v812 = vadd.f32 %v699, %v811
  %813 = vmatmul.f32.gmra.mxu0 %v58
  %v814 = vpop.f32.mrf.mxu0
  %v815 = vadd.f32 %v702, %v814
  %816 = vmatmul.f32.gmra.mxu0 %v65
  %v817 = vpop.f32.mrf.mxu0
  %v818 = vadd.f32 %v705, %v817
  %819 = vmatmul.f32.gmra.mxu0 %v72
  %v820 = vpop.f32.mrf.mxu0
  %v821 = vadd.f32 %v708, %v820
  %822 = vmatmul.f32.gmra.mxu0 %v79
  %v823 = vpop.f32.mrf.mxu0
  %v824 = vadd.f32 %v711, %v823
  %825 = vmatmul.f32.gmra.mxu0 %v86
  %v826 = vpop.f32.mrf.mxu0
  %v827 = vadd.f32 %v714, %v826
  %828 = vmatmul.f32.gmra.mxu0 %v93
  %v829 = vpop.f32.mrf.mxu0
  %v830 = vadd.f32 %v717, %v829
  %831 = vmatmul.f32.gmra.mxu0 %v100
  %v832 = vpop.f32.mrf.mxu0
  %v833 = vadd.f32 %v720, %v832
  %834 = vmatmul.f32.gmra.mxu0 %v107
  %v835 = vpop.f32.mrf.mxu0
  %v836 = vadd.f32 %v723, %v835
  %837 = vmatmul.f32.gmra.mxu0 %v114
  %v838 = vpop.f32.mrf.mxu0
  %v839 = vadd.f32 %v726, %v838
  %840 = vmatmul.f32.gmra.mxu0 %v121
  %v841 = vpop.f32.mrf.mxu0
  %v842 = vadd.f32 %v729, %v841
  %843 = vmatmul.f32.gmra.mxu0 %v128
  %v844 = vpop.f32.mrf.mxu0
  %v845 = vadd.f32 %v732, %v844
  %846 = vmatmul.f32.gmra.mxu0 %v135
  %v847 = vpop.f32.mrf.mxu0
  %v848 = vadd.f32 %v735, %v847
  %849 = vmatmul.f32.gmra.mxu0 %v142
  %v850 = vpop.f32.mrf.mxu0
  %v851 = vadd.f32 %v738, %v850
  %852 = vmatmul.f32.gmra.mxu0 %v149
  %v853 = vpop.f32.mrf.mxu0
  %v854 = vadd.f32 %v741, %v853
  %855 = vmatmul.f32.gmra.mxu0 %v156
  %v856 = vpop.f32.mrf.mxu0
  %v857 = vadd.f32 %v744, %v856
  %858 = vmatmul.f32.gmra.mxu0 %v163
  %v859 = vpop.f32.mrf.mxu0
  %v860 = vadd.f32 %v747, %v859
  %861 = vmatmul.f32.gmra.mxu0 %v170
  %v862 = vpop.f32.mrf.mxu0
  %v863 = vadd.f32 %v750, %v862
  %864 = vmatmul.f32.gmra.mxu0 %v177
  %v865 = vpop.f32.mrf.mxu0
  %v866 = vadd.f32 %v753, %v865
  %867 = vmatmul.f32.gmra.mxu0 %v184
  %v868 = vpop.f32.mrf.mxu0
  %v869 = vadd.f32 %v756, %v868
  %870 = vmatmul.f32.gmra.mxu0 %v191
  %v871 = vpop.f32.mrf.mxu0
  %v872 = vadd.f32 %v759, %v871
  %873 = vmatmul.f32.gmra.mxu0 %v198
  %v874 = vpop.f32.mrf.mxu0
  %v875 = vadd.f32 %v762, %v874
  %876 = vmatmul.f32.gmra.mxu0 %v205
  %v877 = vpop.f32.mrf.mxu0
  %v878 = vadd.f32 %v765, %v877
  %879 = vmatmul.f32.gmra.mxu0 %v212
  %v880 = vpop.f32.mrf.mxu0
  %v881 = vadd.f32 %v768, %v880
  %882 = vmatmul.f32.gmra.mxu0 %v219
  %v883 = vpop.f32.mrf.mxu0
  %v884 = vadd.f32 %v771, %v883
  %885 = vmatmul.f32.gmra.mxu0 %v226
  %v886 = vpop.f32.mrf.mxu0
  %v887 = vadd.f32 %v774, %v886
  %888 = vmatmul.f32.gmra.mxu0 %v233
  %v889 = vpop.f32.mrf.mxu0
  %v890 = vadd.f32 %v777, %v889
  %891 = vmatmul.f32.gmra.mxu0 %v240
  %v892 = vpop.f32.mrf.mxu0
  %v893 = vadd.f32 %v780, %v892
  %894 = vdwg.mxu0
  %895 = vmatpush.msra.mxu0 %v323
  %896 = vmatpush.msra.mxu0 %v322
  %897 = vmatpush.msra.mxu0 %v321
  %898 = vmatpush.msra.mxu0 %v320
  %899 = vmatpush.msra.mxu0 %v319
  %900 = vmatpush.msra.mxu0 %v318
  %901 = vmatpush.msra.mxu0 %v317
  %902 = vmatpush.msra.mxu0 %v316
  %903 = vmatpush.msra.mxu0 %v315
  %904 = vmatpush.msra.mxu0 %v314
  %905 = vmatpush.msra.mxu0 %v313
  %906 = vmatpush.msra.mxu0 %v312
  %907 = vmatpush.msra.mxu0 %v311
  %908 = vmatpush.msra.mxu0 %v310
  %909 = vmatpush.msra.mxu0 %v309
  %910 = vmatpush.msra.mxu0 %v308
  %911 = vmatmul.f32.gmra.mxu0 %v24
  %v912 = vpop.f32.mrf.mxu0
  %v913 = vadd.f32 %v800, %v912
  %914 = vmatmul.f32.gmra.mxu0 %v31
  %v915 = vpop.f32.mrf.mxu0
  %v916 = vadd.f32 %v803, %v915
  %917 = vmatmul.f32.gmra.mxu0 %v38
  %v918 = vpop.f32.mrf.mxu0
  %v919 = vadd.f32 %v806, %v918
  %920 = vmatmul.f32.gmra.mxu0 %v45
  %v921 = vpop.f32.mrf.mxu0
  %v922 = vadd.f32 %v809, %v921
  %923 = vmatmul.f32.gmra.mxu0 %v52
  %v924 = vpop.f32.mrf.mxu0
  %v925 = vadd.f32 %v812, %v924
  %926 = vmatmul.f32.gmra.mxu0 %v59
  %v927 = vpop.f32.mrf.mxu0
  %v928 = vadd.f32 %v815, %v927
  %929 = vmatmul.f32.gmra.mxu0 %v66
  %v930 = vpop.f32.mrf.mxu0
  %v931 = vadd.f32 %v818, %v930
  %932 = vmatmul.f32.gmra.mxu0 %v73
  %v933 = vpop.f32.mrf.mxu0
  %v934 = vadd.f32 %v821, %v933
  %935 = vmatmul.f32.gmra.mxu0 %v80
  %v936 = vpop.f32.mrf.mxu0
  %v937 = vadd.f32 %v824, %v936
  %938 = vmatmul.f32.gmra.mxu0 %v87
  %v939 = vpop.f32.mrf.mxu0
  %v940 = vadd.f32 %v827, %v939
  %941 = vmatmul.f32.gmra.mxu0 %v94
  %v942 = vpop.f32.mrf.mxu0
  %v943 = vadd.f32 %v830, %v942
  %944 = vmatmul.f32.gmra.mxu0 %v101
  %v945 = vpop.f32.mrf.mxu0
  %v946 = vadd.f32 %v833, %v945
  %947 = vmatmul.f32.gmra.mxu0 %v108
  %v948 = vpop.f32.mrf.mxu0
  %v949 = vadd.f32 %v836, %v948
  %950 = vmatmul.f32.gmra.mxu0 %v115
  %v951 = vpop.f32.mrf.mxu0
  %v952 = vadd.f32 %v839, %v951
  %953 = vmatmul.f32.gmra.mxu0 %v122
  %v954 = vpop.f32.mrf.mxu0
  %v955 = vadd.f32 %v842, %v954
  %956 = vmatmul.f32.gmra.mxu0 %v129
  %v957 = vpop.f32.mrf.mxu0
  %v958 = vadd.f32 %v845, %v957
  %959 = vmatmul.f32.gmra.mxu0 %v136
  %v960 = vpop.f32.mrf.mxu0
  %v961 = vadd.f32 %v848, %v960
  %962 = vmatmul.f32.gmra.mxu0 %v143
  %v963 = vpop.f32.mrf.mxu0
  %v964 = vadd.f32 %v851, %v963
  %965 = vmatmul.f32.gmra.mxu0 %v150
  %v966 = vpop.f32.mrf.mxu0
  %v967 = vadd.f32 %v854, %v966
  %968 = vmatmul.f32.gmra.mxu0 %v157
  %v969 = vpop.f32.mrf.mxu0
  %v970 = vadd.f32 %v857, %v969
  %971 = vmatmul.f32.gmra.mxu0 %v164
  %v972 = vpop.f32.mrf.mxu0
  %v973 = vadd.f32 %v860, %v972
  %974 = vmatmul.f32.gmra.mxu0 %v171
  %v975 = vpop.f32.mrf.mxu0
  %v976 = vadd.f32 %v863, %v975
  %977 = vmatmul.f32.gmra.mxu0 %v178
  %v978 = vpop.f32.mrf.mxu0
  %v979 = vadd.f32 %v866, %v978
  %980 = vmatmul.f32.gmra.mxu0 %v185
  %v981 = vpop.f32.mrf.mxu0
  %v982 = vadd.f32 %v869, %v981
  %983 = vmatmul.f32.gmra.mxu0 %v192
  %v984 = vpop.f32.mrf.mxu0
  %v985 = vadd.f32 %v872, %v984
  %986 = vmatmul.f32.gmra.mxu0 %v199
  %v987 = vpop.f32.mrf.mxu0
  %v988 = vadd.f32 %v875, %v987
  %989 = vmatmul.f32.gmra.mxu0 %v206
  %v990 = vpop.f32.mrf.mxu0
  %v991 = vadd.f32 %v878, %v990
  %992 = vmatmul.f32.gmra.mxu0 %v213
  %v993 = vpop.f32.mrf.mxu0
  %v994 = vadd.f32 %v881, %v993
  %995 = vmatmul.f32.gmra.mxu0 %v220
  %v996 = vpop.f32.mrf.mxu0
  %v997 = vadd.f32 %v884, %v996
  %998 = vmatmul.f32.gmra.mxu0 %v227
  %v999 = vpop.f32.mrf.mxu0
  %v1000 = vadd.f32 %v887, %v999
  %1001 = vmatmul.f32.gmra.mxu0 %v234
  %v1002 = vpop.f32.mrf.mxu0
  %v1003 = vadd.f32 %v890, %v1002
  %1004 = vmatmul.f32.gmra.mxu0 %v241
  %v1005 = vpop.f32.mrf.mxu0
  %v1006 = vadd.f32 %v893, %v1005
  %1007 = vdwg.mxu0
  %1008 = vmatpush.msra.mxu0 %v339
  %1009 = vmatpush.msra.mxu0 %v338
  %1010 = vmatpush.msra.mxu0 %v337
  %1011 = vmatpush.msra.mxu0 %v336
  %1012 = vmatpush.msra.mxu0 %v335
  %1013 = vmatpush.msra.mxu0 %v334
  %1014 = vmatpush.msra.mxu0 %v333
  %1015 = vmatpush.msra.mxu0 %v332
  %1016 = vmatpush.msra.mxu0 %v331
  %1017 = vmatpush.msra.mxu0 %v330
  %1018 = vmatpush.msra.mxu0 %v329
  %1019 = vmatpush.msra.mxu0 %v328
  %1020 = vmatpush.msra.mxu0 %v327
  %1021 = vmatpush.msra.mxu0 %v326
  %1022 = vmatpush.msra.mxu0 %v325
  %1023 = vmatpush.msra.mxu0 %v324
  %1024 = vmatmul.f32.gmra.mxu0 %v25
  %v1025 = vpop.f32.mrf.mxu0
  %v1026 = vadd.f32 %v913, %v1025
  %1027 = vmatmul.f32.gmra.mxu0 %v32
  %v1028 = vpop.f32.mrf.mxu0
  %v1029 = vadd.f32 %v916, %v1028
  %1030 = vmatmul.f32.gmra.mxu0 %v39
  %v1031 = vpop.f32.mrf.mxu0
  %v1032 = vadd.f32 %v919, %v1031
  %1033 = vmatmul.f32.gmra.mxu0 %v46
  %v1034 = vpop.f32.mrf.mxu0
  %v1035 = vadd.f32 %v922, %v1034
  %1036 = vmatmul.f32.gmra.mxu0 %v53
  %v1037 = vpop.f32.mrf.mxu0
  %v1038 = vadd.f32 %v925, %v1037
  %1039 = vmatmul.f32.gmra.mxu0 %v60
  %v1040 = vpop.f32.mrf.mxu0
  %v1041 = vadd.f32 %v928, %v1040
  %1042 = vmatmul.f32.gmra.mxu0 %v67
  %v1043 = vpop.f32.mrf.mxu0
  %v1044 = vadd.f32 %v931, %v1043
  %1045 = vmatmul.f32.gmra.mxu0 %v74
  %v1046 = vpop.f32.mrf.mxu0
  %v1047 = vadd.f32 %v934, %v1046
  %1048 = vmatmul.f32.gmra.mxu0 %v81
  %v1049 = vpop.f32.mrf.mxu0
  %v1050 = vadd.f32 %v937, %v1049
  %1051 = vmatmul.f32.gmra.mxu0 %v88
  %v1052 = vpop.f32.mrf.mxu0
  %v1053 = vadd.f32 %v940, %v1052
  %1054 = vmatmul.f32.gmra.mxu0 %v95
  %v1055 = vpop.f32.mrf.mxu0
  %v1056 = vadd.f32 %v943, %v1055
  %1057 = vmatmul.f32.gmra.mxu0 %v102
  %v1058 = vpop.f32.mrf.mxu0
  %v1059 = vadd.f32 %v946, %v1058
  %1060 = vmatmul.f32.gmra.mxu0 %v109
  %v1061 = vpop.f32.mrf.mxu0
  %v1062 = vadd.f32 %v949, %v1061
  %1063 = vmatmul.f32.gmra.mxu0 %v116
  %v1064 = vpop.f32.mrf.mxu0
  %v1065 = vadd.f32 %v952, %v1064
  %1066 = vmatmul.f32.gmra.mxu0 %v123
  %v1067 = vpop.f32.mrf.mxu0
  %v1068 = vadd.f32 %v955, %v1067
  %1069 = vmatmul.f32.gmra.mxu0 %v130
  %v1070 = vpop.f32.mrf.mxu0
  %v1071 = vadd.f32 %v958, %v1070
  %1072 = vmatmul.f32.gmra.mxu0 %v137
  %v1073 = vpop.f32.mrf.mxu0
  %v1074 = vadd.f32 %v961, %v1073
  %1075 = vmatmul.f32.gmra.mxu0 %v144
  %v1076 = vpop.f32.mrf.mxu0
  %v1077 = vadd.f32 %v964, %v1076
  %1078 = vmatmul.f32.gmra.mxu0 %v151
  %v1079 = vpop.f32.mrf.mxu0
  %v1080 = vadd.f32 %v967, %v1079
  %1081 = vmatmul.f32.gmra.mxu0 %v158
  %v1082 = vpop.f32.mrf.mxu0
  %v1083 = vadd.f32 %v970, %v1082
  %1084 = vmatmul.f32.gmra.mxu0 %v165
  %v1085 = vpop.f32.mrf.mxu0
  %v1086 = vadd.f32 %v973, %v1085
  %1087 = vmatmul.f32.gmra.mxu0 %v172
  %v1088 = vpop.f32.mrf.mxu0
  %v1089 = vadd.f32 %v976, %v1088
  %1090 = vmatmul.f32.gmra.mxu0 %v179
  %v1091 = vpop.f32.mrf.mxu0
  %v1092 = vadd.f32 %v979, %v1091
  %1093 = vmatmul.f32.gmra.mxu0 %v186
  %v1094 = vpop.f32.mrf.mxu0
  %v1095 = vadd.f32 %v982, %v1094
  %1096 = vmatmul.f32.gmra.mxu0 %v193
  %v1097 = vpop.f32.mrf.mxu0
  %v1098 = vadd.f32 %v985, %v1097
  %1099 = vmatmul.f32.gmra.mxu0 %v200
  %v1100 = vpop.f32.mrf.mxu0
  %v1101 = vadd.f32 %v988, %v1100
  %1102 = vmatmul.f32.gmra.mxu0 %v207
  %v1103 = vpop.f32.mrf.mxu0
  %v1104 = vadd.f32 %v991, %v1103
  %1105 = vmatmul.f32.gmra.mxu0 %v214
  %v1106 = vpop.f32.mrf.mxu0
  %v1107 = vadd.f32 %v994, %v1106
  %1108 = vmatmul.f32.gmra.mxu0 %v221
  %v1109 = vpop.f32.mrf.mxu0
  %v1110 = vadd.f32 %v997, %v1109
  %1111 = vmatmul.f32.gmra.mxu0 %v228
  %v1112 = vpop.f32.mrf.mxu0
  %v1113 = vadd.f32 %v1000, %v1112
  %1114 = vmatmul.f32.gmra.mxu0 %v235
  %v1115 = vpop.f32.mrf.mxu0
  %v1116 = vadd.f32 %v1003, %v1115
  %1117 = vmatmul.f32.gmra.mxu0 %v242
  %v1118 = vpop.f32.mrf.mxu0
  %v1119 = vadd.f32 %v1006, %v1118
  %1120 = vdwg.mxu0
  %1121 = vmatpush.msra.mxu0 0.0
  %1122 = vmatpush.msra.mxu0 0.0
  %1123 = vmatpush.msra.mxu0 0.0
  %1124 = vmatpush.msra.mxu0 0.0
  %1125 = vmatpush.msra.mxu0 0.0
  %1126 = vmatpush.msra.mxu0 0.0
  %1127 = vmatpush.msra.mxu0 0.0
  %1128 = vmatpush.msra.mxu0 0.0
  %1129 = vmatpush.msra.mxu0 0.0
  %1130 = vmatpush.msra.mxu0 0.0
  %1131 = vmatpush.msra.mxu0 0.0
  %1132 = vmatpush.msra.mxu0 0.0
  %1133 = vmatpush.msra.mxu0 0.0
  %1134 = vmatpush.msra.mxu0 0.0
  %1135 = vmatpush.msra.mxu0 %v341
  %1136 = vmatpush.msra.mxu0 %v340
  %1137 = vmatmul.f32.gmra.mxu0 %v348
  %v1138 = vpop.f32.mrf.mxu0
  %v1139 = vadd.f32 %v1026, %v1138
  %1140 = vmatmul.f32.gmra.mxu0 %v351
  %v1141 = vpop.f32.mrf.mxu0
  %v1142 = vadd.f32 %v1029, %v1141
  %1143 = vmatmul.f32.gmra.mxu0 %v354
  %v1144 = vpop.f32.mrf.mxu0
  %v1145 = vadd.f32 %v1032, %v1144
  %1146 = vmatmul.f32.gmra.mxu0 %v357
  %v1147 = vpop.f32.mrf.mxu0
  %v1148 = vadd.f32 %v1035, %v1147
  %1149 = vmatmul.f32.gmra.mxu0 %v360
  %v1150 = vpop.f32.mrf.mxu0
  %v1151 = vadd.f32 %v1038, %v1150
  %1152 = vmatmul.f32.gmra.mxu0 %v363
  %v1153 = vpop.f32.mrf.mxu0
  %v1154 = vadd.f32 %v1041, %v1153
  %1155 = vmatmul.f32.gmra.mxu0 %v366
  %v1156 = vpop.f32.mrf.mxu0
  %v1157 = vadd.f32 %v1044, %v1156
  %1158 = vmatmul.f32.gmra.mxu0 %v369
  %v1159 = vpop.f32.mrf.mxu0
  %v1160 = vadd.f32 %v1047, %v1159
  %1161 = vmatmul.f32.gmra.mxu0 %v372
  %v1162 = vpop.f32.mrf.mxu0
  %v1163 = vadd.f32 %v1050, %v1162
  %1164 = vmatmul.f32.gmra.mxu0 %v375
  %v1165 = vpop.f32.mrf.mxu0
  %v1166 = vadd.f32 %v1053, %v1165
  %1167 = vmatmul.f32.gmra.mxu0 %v378
  %v1168 = vpop.f32.mrf.mxu0
  %v1169 = vadd.f32 %v1056, %v1168
  %1170 = vmatmul.f32.gmra.mxu0 %v381
  %v1171 = vpop.f32.mrf.mxu0
  %v1172 = vadd.f32 %v1059, %v1171
  %1173 = vmatmul.f32.gmra.mxu0 %v384
  %v1174 = vpop.f32.mrf.mxu0
  %v1175 = vadd.f32 %v1062, %v1174
  %1176 = vmatmul.f32.gmra.mxu0 %v387
  %v1177 = vpop.f32.mrf.mxu0
  %v1178 = vadd.f32 %v1065, %v1177
  %1179 = vmatmul.f32.gmra.mxu0 %v390
  %v1180 = vpop.f32.mrf.mxu0
  %v1181 = vadd.f32 %v1068, %v1180
  %1182 = vmatmul.f32.gmra.mxu0 %v393
  %v1183 = vpop.f32.mrf.mxu0
  %v1184 = vadd.f32 %v1071, %v1183
  %1185 = vmatmul.f32.gmra.mxu0 %v396
  %v1186 = vpop.f32.mrf.mxu0
  %v1187 = vadd.f32 %v1074, %v1186
  %1188 = vmatmul.f32.gmra.mxu0 %v399
  %v1189 = vpop.f32.mrf.mxu0
  %v1190 = vadd.f32 %v1077, %v1189
  %1191 = vmatmul.f32.gmra.mxu0 %v402
  %v1192 = vpop.f32.mrf.mxu0
  %v1193 = vadd.f32 %v1080, %v1192
  %1194 = vmatmul.f32.gmra.mxu0 %v405
  %v1195 = vpop.f32.mrf.mxu0
  %v1196 = vadd.f32 %v1083, %v1195
  %1197 = vmatmul.f32.gmra.mxu0 %v408
  %v1198 = vpop.f32.mrf.mxu0
  %v1199 = vadd.f32 %v1086, %v1198
  %1200 = vmatmul.f32.gmra.mxu0 %v411
  %v1201 = vpop.f32.mrf.mxu0
  %v1202 = vadd.f32 %v1089, %v1201
  %1203 = vmatmul.f32.gmra.mxu0 %v414
  %v1204 = vpop.f32.mrf.mxu0
  %v1205 = vadd.f32 %v1092, %v1204
  %1206 = vmatmul.f32.gmra.mxu0 %v417
  %v1207 = vpop.f32.mrf.mxu0
  %v1208 = vadd.f32 %v1095, %v1207
  %1209 = vmatmul.f32.gmra.mxu0 %v420
  %v1210 = vpop.f32.mrf.mxu0
  %v1211 = vadd.f32 %v1098, %v1210
  %1212 = vmatmul.f32.gmra.mxu0 %v423
  %v1213 = vpop.f32.mrf.mxu0
  %v1214 = vadd.f32 %v1101, %v1213
  %1215 = vmatmul.f32.gmra.mxu0 %v426
  %v1216 = vpop.f32.mrf.mxu0
  %v1217 = vadd.f32 %v1104, %v1216
  %1218 = vmatmul.f32.gmra.mxu0 %v429
  %v1219 = vpop.f32.mrf.mxu0
  %v1220 = vadd.f32 %v1107, %v1219
  %1221 = vmatmul.f32.gmra.mxu0 %v432
  %v1222 = vpop.f32.mrf.mxu0
  %v1223 = vadd.f32 %v1110, %v1222
  %1224 = vmatmul.f32.gmra.mxu0 %v435
  %v1225 = vpop.f32.mrf.mxu0
  %v1226 = vadd.f32 %v1113, %v1225
  %1227 = vmatmul.f32.gmra.mxu0 %v438
  %v1228 = vpop.f32.mrf.mxu0
  %v1229 = vadd.f32 %v1116, %v1228
  %1230 = vmatmul.f32.gmra.mxu0 %v441
  %v1231 = vpop.f32.mrf.mxu0
  %v1232 = vadd.f32 %v1119, %v1231
  %1233 = vdwg.mxu0
  %v1234 = vmax.f32 %v1139, 0.0
  %v1235 = vmax.f32 %v1142, 0.0
  %v1236 = vmax.f32 %v1145, 0.0
  %v1237 = vmax.f32 %v1148, 0.0
  %v1238 = vmax.f32 %v1151, 0.0
  %v1239 = vmax.f32 %v1154, 0.0
  %v1240 = vmax.f32 %v1157, 0.0
  %v1241 = vmax.f32 %v1160, 0.0
  %v1242 = vmax.f32 %v1163, 0.0
  %v1243 = vmax.f32 %v1166, 0.0
  %v1244 = vmax.f32 %v1169, 0.0
  %v1245 = vmax.f32 %v1172, 0.0
  %v1246 = vmax.f32 %v1175, 0.0
  %v1247 = vmax.f32 %v1178, 0.0
  %v1248 = vmax.f32 %v1181, 0.0
  %v1249 = vmax.f32 %v1184, 0.0
  %v1250 = vmax.f32 %v1187, 0.0
  %v1251 = vmax.f32 %v1190, 0.0
  %v1252 = vmax.f32 %v1193, 0.0
  %v1253 = vmax.f32 %v1196, 0.0
  %v1254 = vmax.f32 %v1199, 0.0
  %v1255 = vmax.f32 %v1202, 0.0
  %v1256 = vmax.f32 %v1205, 0.0
  %v1257 = vmax.f32 %v1208, 0.0
  %v1258 = vmax.f32 %v1211, 0.0
  %v1259 = vmax.f32 %v1214, 0.0
  %v1260 = vmax.f32 %v1217, 0.0
  %v1261 = vmax.f32 %v1220, 0.0
  %v1262 = vmax.f32 %v1223, 0.0
  %v1263 = vmax.f32 %v1226, 0.0
  %v1264 = vmax.f32 %v1229, 0.0
  %v1265 = vmax.f32 %v1232, 0.0
  %v1266 = vld [vmem:[%s3] sm:$0xff]
  %v1267 = vld [vmem:[%s3 + $0x8] sm:$0xff]
  %v1268 = vld [vmem:[%s3 + $0x10] sm:$0xff]
  %v1269 = vld [vmem:[%s3 + $0x18] sm:$0xff]
  %v1270 = vld [vmem:[%s3 + $0x20] sm:$0xff]
  %v1271 = vld [vmem:[%s3 + $0x28] sm:$0xff]
  %v1272 = vld [vmem:[%s3 + $0x30] sm:$0xff]
  %v1273 = vld [vmem:[%s3 + $0x38] sm:$0xff]
  %v1274 = vld [vmem:[%s3 + $0x40] sm:$0xff]
  %v1275 = vld [vmem:[%s3 + $0x48] sm:$0xff]
  %v1276 = vld [vmem:[%s3 + $0x50] sm:$0xff]
  %v1277 = vld [vmem:[%s3 + $0x58] sm:$0xff]
  %v1278 = vld [vmem:[%s3 + $0x60] sm:$0xff]
  %v1279 = vld [vmem:[%s3 + $0x68] sm:$0xff]
  %v1280 = vld [vmem:[%s3 + $0x70] sm:$0xff]
  %v1281 = vld [vmem:[%s3 + $0x78] sm:$0xff]
  %v1282 = vld [vmem:[%s4] sm:$0x1]
  %v1284 = vperm.slane %v1282, 0
  %1286 = vmatpush.msra.mxu0 %v1281
  %1287 = vmatpush.msra.mxu0 %v1280
  %1288 = vmatpush.msra.mxu0 %v1279
  %1289 = vmatpush.msra.mxu0 %v1278
  %1290 = vmatpush.msra.mxu0 %v1277
  %1291 = vmatpush.msra.mxu0 %v1276
  %1292 = vmatpush.msra.mxu0 %v1275
  %1293 = vmatpush.msra.mxu0 %v1274
  %1294 = vmatpush.msra.mxu0 %v1273
  %1295 = vmatpush.msra.mxu0 %v1272
  %1296 = vmatpush.msra.mxu0 %v1271
  %1297 = vmatpush.msra.mxu0 %v1270
  %1298 = vmatpush.msra.mxu0 %v1269
  %1299 = vmatpush.msra.mxu0 %v1268
  %1300 = vmatpush.msra.mxu0 %v1267
  %1301 = vmatpush.msra.mxu0 %v1266
  %1302 = vmatmul.f32.gmra.mxu0 %v1234
  %v1303 = vpop.f32.mrf.mxu0
  %v1304 = vadd.f32 %v1284, %v1303
  %1305 = vmatmul.f32.gmra.mxu0 %v1235
  %v1306 = vpop.f32.mrf.mxu0
  %v1307 = vadd.f32 %v1284, %v1306
  %1308 = vmatmul.f32.gmra.mxu0 %v1236
  %v1309 = vpop.f32.mrf.mxu0
  %v1310 = vadd.f32 %v1284, %v1309
  %1311 = vmatmul.f32.gmra.mxu0 %v1237
  %v1312 = vpop.f32.mrf.mxu0
  %v1313 = vadd.f32 %v1284, %v1312
  %1314 = vmatmul.f32.gmra.mxu0 %v1238
  %v1315 = vpop.f32.mrf.mxu0
  %v1316 = vadd.f32 %v1284, %v1315
  %1317 = vmatmul.f32.gmra.mxu0 %v1239
  %v1318 = vpop.f32.mrf.mxu0
  %v1319 = vadd.f32 %v1284, %v1318
  %1320 = vmatmul.f32.gmra.mxu0 %v1240
  %v1321 = vpop.f32.mrf.mxu0
  %v1322 = vadd.f32 %v1284, %v1321
  %1323 = vmatmul.f32.gmra.mxu0 %v1241
  %v1324 = vpop.f32.mrf.mxu0
  %v1325 = vadd.f32 %v1284, %v1324
  %1326 = vmatmul.f32.gmra.mxu0 %v1242
  %v1327 = vpop.f32.mrf.mxu0
  %v1328 = vadd.f32 %v1284, %v1327
  %1329 = vmatmul.f32.gmra.mxu0 %v1243
  %v1330 = vpop.f32.mrf.mxu0
  %v1331 = vadd.f32 %v1284, %v1330
  %1332 = vmatmul.f32.gmra.mxu0 %v1244
  %v1333 = vpop.f32.mrf.mxu0
  %v1334 = vadd.f32 %v1284, %v1333
  %1335 = vmatmul.f32.gmra.mxu0 %v1245
  %v1336 = vpop.f32.mrf.mxu0
  %v1337 = vadd.f32 %v1284, %v1336
  %1338 = vmatmul.f32.gmra.mxu0 %v1246
  %v1339 = vpop.f32.mrf.mxu0
  %v1340 = vadd.f32 %v1284, %v1339
  %1341 = vmatmul.f32.gmra.mxu0 %v1247
  %v1342 = vpop.f32.mrf.mxu0
  %v1343 = vadd.f32 %v1284, %v1342
  %1344 = vmatmul.f32.gmra.mxu0 %v1248
  %v1345 = vpop.f32.mrf.mxu0
  %v1346 = vadd.f32 %v1284, %v1345
  %1347 = vmatmul.f32.gmra.mxu0 %v1249
  %v1348 = vpop.f32.mrf.mxu0
  %v1349 = vadd.f32 %v1284, %v1348
  %1350 = vmatmul.f32.gmra.mxu0 %v1250
  %v1351 = vpop.f32.mrf.mxu0
  %v1352 = vadd.f32 %v1284, %v1351
  %1353 = vmatmul.f32.gmra.mxu0 %v1251
  %v1354 = vpop.f32.mrf.mxu0
  %v1355 = vadd.f32 %v1284, %v1354
  %1356 = vmatmul.f32.gmra.mxu0 %v1252
  %v1357 = vpop.f32.mrf.mxu0
  %v1358 = vadd.f32 %v1284, %v1357
  %1359 = vmatmul.f32.gmra.mxu0 %v1253
  %v1360 = vpop.f32.mrf.mxu0
  %v1361 = vadd.f32 %v1284, %v1360
  %1362 = vmatmul.f32.gmra.mxu0 %v1254
  %v1363 = vpop.f32.mrf.mxu0
  %v1364 = vadd.f32 %v1284, %v1363
  %1365 = vmatmul.f32.gmra.mxu0 %v1255
  %v1366 = vpop.f32.mrf.mxu0
  %v1367 = vadd.f32 %v1284, %v1366
  %1368 = vmatmul.f32.gmra.mxu0 %v1256
  %v1369 = vpop.f32.mrf.mxu0
  %v1370 = vadd.f32 %v1284, %v1369
  %1371 = vmatmul.f32.gmra.mxu0 %v1257
  %v1372 = vpop.f32.mrf.mxu0
  %v1373 = vadd.f32 %v1284, %v1372
  %1374 = vmatmul.f32.gmra.mxu0 %v1258
  %v1375 = vpop.f32.mrf.mxu0
  %v1376 = vadd.f32 %v1284, %v1375
  %1377 = vmatmul.f32.gmra.mxu0 %v1259
  %v1378 = vpop.f32.mrf.mxu0
  %v1379 = vadd.f32 %v1284, %v1378
  %1380 = vmatmul.f32.gmra.mxu0 %v1260
  %v1381 = vpop.f32.mrf.mxu0
  %v1382 = vadd.f32 %v1284, %v1381
  %1383 = vmatmul.f32.gmra.mxu0 %v1261
  %v1384 = vpop.f32.mrf.mxu0
  %v1385 = vadd.f32 %v1284, %v1384
  %1386 = vmatmul.f32.gmra.mxu0 %v1262
  %v1387 = vpop.f32.mrf.mxu0
  %v1388 = vadd.f32 %v1284, %v1387
  %1389 = vmatmul.f32.gmra.mxu0 %v1263
  %v1390 = vpop.f32.mrf.mxu0
  %v1391 = vadd.f32 %v1284, %v1390
  %1392 = vmatmul.f32.gmra.mxu0 %v1264
  %v1393 = vpop.f32.mrf.mxu0
  %v1394 = vadd.f32 %v1284, %v1393
  %1395 = vmatmul.f32.gmra.mxu0 %v1265
  %v1396 = vpop.f32.mrf.mxu0
  %v1397 = vadd.f32 %v1284, %v1396
  %1398 = vdwg.mxu0
  %1399 = vst [vmem:[%s5] sm:$0xff] %v1304
  %1400 = vst [vmem:[%s5 + $0x8] sm:$0xff] %v1307
  %1401 = vst [vmem:[%s5 + $0x10] sm:$0xff] %v1310
  %1402 = vst [vmem:[%s5 + $0x18] sm:$0xff] %v1313
  %1403 = vst [vmem:[%s5 + $0x20] sm:$0xff] %v1316
  %1404 = vst [vmem:[%s5 + $0x28] sm:$0xff] %v1319
  %1405 = vst [vmem:[%s5 + $0x30] sm:$0xff] %v1322
  %1406 = vst [vmem:[%s5 + $0x38] sm:$0xff] %v1325
  %1407 = vst [vmem:[%s5 + $0x40] sm:$0xff] %v1328
  %1408 = vst [vmem:[%s5 + $0x48] sm:$0xff] %v1331
  %1409 = vst [vmem:[%s5 + $0x50] sm:$0xff] %v1334
  %1410 = vst [vmem:[%s5 + $0x58] sm:$0xff] %v1337
  %1411 = vst [vmem:[%s5 + $0x60] sm:$0xff] %v1340
  %1412 = vst [vmem:[%s5 + $0x68] sm:$0xff] %v1343
  %1413 = vst [vmem:[%s5 + $0x70] sm:$0xff] %v1346
  %1414 = vst [vmem:[%s5 + $0x78] sm:$0xff] %v1349
  %1415 = vst [vmem:[%s5 + $0x80] sm:$0xff] %v1352
  %1416 = vst [vmem:[%s5 + $0x88] sm:$0xff] %v1355
  %1417 = vst [vmem:[%s5 + $0x90] sm:$0xff] %v1358
  %1418 = vst [vmem:[%s5 + $0x98] sm:$0xff] %v1361
  %1419 = vst [vmem:[%s5 + $0xa0] sm:$0xff] %v1364
  %1420 = vst [vmem:[%s5 + $0xa8] sm:$0xff] %v1367
  %1421 = vst [vmem:[%s5 + $0xb0] sm:$0xff] %v1370
  %1422 = vst [vmem:[%s5 + $0xb8] sm:$0xff] %v1373
  %1423 = vst [vmem:[%s5 + $0xc0] sm:$0xff] %v1376
  %1424 = vst [vmem:[%s5 + $0xc8] sm:$0xff] %v1379
  %1425 = vst [vmem:[%s5 + $0xd0] sm:$0xff] %v1382
  %1426 = vst [vmem:[%s5 + $0xd8] sm:$0xff] %v1385
  %1427 = vst [vmem:[%s5 + $0xe0] sm:$0xff] %v1388
  %1428 = vst [vmem:[%s5 + $0xe8] sm:$0xff] %v1391
  %1429 = vst [vmem:[%s5 + $0xf0] sm:$0xff] %v1394
  %1430 = vst [vmem:[%s5 + $0xf8] sm:$0xff] %v1397
  // Predicated region
  $region22: #{net_forward.1} parent=0 // pred_check
    _
  $region23: #{net_forward.1} parent=0 // pred_check_branch
    %1432 = sbr.rel (0) target = $region25
  $region24: #{net_forward.1} parent=0 // pred_region
    _
  $region25: #{net_forward.1} parent=0 // pred_fallthru
    _
  // Predicated region
  $region26: #{net_forward.1} parent=0 // pred_check
    _
  $region27: #{net_forward.1} parent=0 // pred_check_branch
    %1434 = sbr.rel (0) target = $region29
  $region28: #{net_forward.1} parent=0 // pred_region
    _
  $region29: #{net_forward.1} parent=0 // pred_fallthru
    _

</llo_original>
